<compile_context>
chip_gen: v5e
topology: v5e:2x2
jax: 0.10.0
libtpu: 0.0.40
codegen_flags: <defaults>
</compile_context>

<pallas_src>
import functools

import jax
import jax.numpy as jnp
from jax.experimental import pallas as pl
from jax.experimental.pallas import tpu as pltpu

F_IN = 38            # fixed by nn.Linear(38, 1)
LANES = 128
FLAT = LANES * F_IN  # 4864 = one lane-dense row per 128 batch rows


# ----------------------------------------------------------------------------
# Kernels
# ----------------------------------------------------------------------------
def _mxu_kernel(xf_ref, bmat_ref, b_ref, o_ref):
    # xf_ref:   [bm, 4864] VMEM   -- 128 batch rows per sublane-row, lane dense
    # bmat_ref: [4864, 128] VMEM  -- banded weight, resident across the grid
    # b_ref:    [1] SMEM          -- bias scalar
    # o_ref:    [bm, 128] VMEM    -- lane-dense outputs (row j of block = batch
    #                                row m*128 + j)
    y = jnp.dot(xf_ref[...], bmat_ref[...], preferred_element_type=jnp.float32)
    y = y + b_ref[0]
    o_ref[...] = jnp.maximum(y, 0.0).astype(o_ref.dtype)


def _vpu_kernel(x_ref, w_ref, b_ref, o_ref):
    # x_ref: [tb, 38] VMEM   w_ref: [1, 38] VMEM (resident)
    # b_ref: [1] SMEM        o_ref: [tb] VMEM (lane-dense 1-D slab)
    y = jnp.sum(x_ref[...] * w_ref[...], axis=-1) + b_ref[0]
    o_ref[...] = jnp.maximum(y, 0.0).astype(o_ref.dtype)


# ----------------------------------------------------------------------------
# Wrappers
# ----------------------------------------------------------------------------
def _linear_relu_mxu(x, weight, bias):
    """Fast path: B % 128 == 0. Dense flat input + banded-weight MXU contraction."""
    B = x.shape[0]
    nrows = B // LANES
    # Pure row-major re-chunk of a contiguous array -> bitcast, no HBM copy.
    xf = x.reshape(nrows, FLAT)

    # Banded weight: bmat[j*38 + f, j] = w[f], zero elsewhere, so that
    # (xf @ bmat)[m, j] = sum_f x[m*128 + j, f] * w[f].
    w = weight.reshape(F_IN)
    eye = jnp.eye(LANES, dtype=x.dtype)
    bmat = (eye[:, None, :] * w[None, :, None]).reshape(FLAT, LANES)

    # Up to 128 sublane rows per tile (= 16384 batch rows, ~2.4 MiB/buffer);
    # shrink so large batches still produce >= 4 grid steps (megacore on v7x).
    if nrows <= 8:
        bm = nrows                                   # block == full dim
    else:
        bm = min(128, ((pl.cdiv(nrows, 4) + 7) // 8) * 8)
    grid = pl.cdiv(nrows, bm)

    out = pl.pallas_call(
        _mxu_kernel,
        out_shape=jax.ShapeDtypeStruct((nrows, LANES), x.dtype),
        grid=(grid,),
        in_specs=[
            pl.BlockSpec((bm, FLAT), lambda i: (i, 0)),            # x slab (pipelined)
            pl.BlockSpec((FLAT, LANES), lambda i: (0, 0)),         # banded weight (resident)
            pl.BlockSpec(memory_space=pltpu.MemorySpace.SMEM),     # bias scalar in SMEM
        ],
        out_specs=pl.BlockSpec((bm, LANES), lambda i: (i, 0)),     # lane-dense output
        compiler_params=pltpu.CompilerParams(
            dimension_semantics=("parallel",),
        ),
        cost_estimate=pl.CostEstimate(
            flops=2 * nrows * FLAT * LANES,
            transcendentals=0,
            bytes_accessed=(nrows * FLAT + FLAT * LANES + nrows * LANES + 1) * 4,
        ),
    )(xf, bmat, bias)

    return out.reshape(B, 1)   # bitcast reshape: (m, j) -> batch row m*128 + j


def _linear_relu_vpu(x, weight, bias, tb_max):
    """Fallback path: any B. VPU multiply + lane reduce, partial trailing block."""
    B = x.shape[0]
    if B <= tb_max:
        tb = B                                        # single block == full dims
    else:
        # Multiple of 128 keeps the 1-D output stores lane-dense; aim for >= 4
        # tiles, capped so 2 x lane-padded x buffers stay well under 16 MiB.
        tb = max(LANES, (min(tb_max, ((pl.cdiv(B, 4) + LANES - 1) // LANES) * LANES)
                         // LANES) * LANES)
    grid = pl.cdiv(B, tb)

    out_flat = pl.pallas_call(
        _vpu_kernel,
        out_shape=jax.ShapeDtypeStruct((B,), x.dtype),
        grid=(grid,),
        in_specs=[
            pl.BlockSpec((tb, F_IN), lambda i: (i, 0)),            # x tiles (pipelined)
            pl.BlockSpec((1, F_IN), lambda i: (0, 0)),             # weight row (resident)
            pl.BlockSpec(memory_space=pltpu.MemorySpace.SMEM),     # bias scalar in SMEM
        ],
        out_specs=pl.BlockSpec((tb,), lambda i: (i,)),             # lane-dense 1-D slab
        compiler_params=pltpu.CompilerParams(
            dimension_semantics=("parallel",),
        ),
        cost_estimate=pl.CostEstimate(
            flops=2 * B * F_IN,
            transcendentals=0,
            bytes_accessed=(B * F_IN + B + F_IN + 1) * 4,
        ),
    )(x, weight, bias)

    return out_flat.reshape(B, 1)


@functools.partial(jax.jit, static_argnames=("tb_max",))
def linear_relu(x, weight, bias, *, tb_max=8192):
    """x: [B, 38] f32, weight: [1, 38] f32 (PyTorch layout), bias: [1] f32 -> [B, 1]."""
    B, f_in = x.shape
    assert f_in == F_IN
    assert weight.shape == (1, F_IN)
    assert bias.shape == (1,)
    if B % LANES == 0:
        return _linear_relu_mxu(x, weight, bias)
    return _linear_relu_vpu(x, weight, bias, tb_max)


def make_params(key):
    # Deterministic synthetic init mimicking nn.Linear(38, 1):
    # weight [1, 38], bias [1], uniform(-1/sqrt(38), 1/sqrt(38)).
    k_w, k_b = jax.random.split(key)
    bound = 1.0 / jnp.sqrt(jnp.float32(F_IN))
    weight = jax.random.uniform(k_w, (1, F_IN), jnp.float32, -bound, bound)
    bias = jax.random.uniform(k_b, (1,), jnp.float32, -bound, bound)
    return weight, bias


if __name__ == "__main__":
    key = jax.random.PRNGKey(0)
    k_x1, k_x2, k_x3, k_p = jax.random.split(key, 4)

    weight, bias = make_params(k_p)

    def ref(xx):
        return jnp.maximum(xx @ weight.T + bias, 0.0)

    # 1) Aligned batch (B % 128 == 0) -> flat MXU path, single tile.
    B1 = 256
    x1 = jax.random.normal(k_x1, (B1, F_IN), jnp.float32)
    out1 = jax.block_until_ready(linear_relu(x1, weight, bias))
    assert out1.shape == (B1, 1)
    assert jnp.allclose(out1, ref(x1), atol=1e-2, rtol=1e-2)

    # 2) Aligned batch, multi-tile MXU path with a partial trailing block
    #    (nrows=10 -> bm=8, grid=2, last block has 2 valid sublane rows).
    B2 = 1280
    x2 = jax.random.normal(k_x2, (B2, F_IN), jnp.float32)
    out2 = jax.block_until_ready(linear_relu(x2, weight, bias))
    assert out2.shape == (B2, 1)
    assert jnp.allclose(out2, ref(x2), atol=1e-2, rtol=1e-2)

    # 3) Ragged batch -> VPU fallback, multi-tile with partial trailing block
    #    (no wrapper-side padding anywhere).
    B3 = 300
    x3 = jax.random.normal(k_x3, (B3, F_IN), jnp.float32)
    out3 = jax.block_until_ready(linear_relu(x3, weight, bias, tb_max=128))
    assert out3.shape == (B3, 1)
    assert jnp.allclose(out3, ref(x3), atol=1e-5, rtol=1e-5)

    print("KERNEL_OK")
</pallas_src>

<mosaic_0001>
module attributes {stable_mosaic.version = 11 : i64} {
  func.func @_mxu_kernel(%arg0: i32, %arg1: memref<2x4864xf32, #tpu.memory_space<vmem>>, %arg2: memref<4864x128xf32, #tpu.memory_space<vmem>>, %arg3: memref<1xf32, #tpu.memory_space<smem>>, %arg4: memref<2x128xf32, #tpu.memory_space<vmem>>) attributes {dimension_semantics = [#tpu.dimension_semantics<parallel>], iteration_bounds = array<i64: 1>, scalar_prefetch = 0 : i64, scratch_operands = 0 : i64, tpu.core_type = #tpu.core_type<tc>, window_params = [{transform_indices = @transform_0, window_bounds = array<i64: 2, 4864>}, {pipeline_mode = #tpu.pipeline_mode<synchronous>, transform_indices = @transform_1, window_bounds = array<i64: 4864, 128>}, {transform_indices = @transform_2, window_bounds = array<i64: 1>}, {transform_indices = @transform_3, window_bounds = array<i64: 2, 128>}]} {
    %c0 = arith.constant 0 : index
    %c0_0 = arith.constant 0 : index
    %0 = vector.load %arg1[%c0, %c0_0] : memref<2x4864xf32, #tpu.memory_space<vmem>>, vector<2x4864xf32>
    %c0_1 = arith.constant 0 : index
    %c0_2 = arith.constant 0 : index
    %1 = vector.load %arg2[%c0_1, %c0_2] : memref<4864x128xf32, #tpu.memory_space<vmem>>, vector<4864x128xf32>
    %cst = arith.constant dense<0.000000e+00> : vector<2x128xf32>
    %2 = tpu.matmul %0, %1, %cst {dimension_numbers = #tpu.dot_dimension_numbers<[1], [0], [0], [1], [0, 0, 1, 1], [], []>} : vector<2x4864xf32>, vector<4864x128xf32>, vector<2x128xf32> -> vector<2x128xf32>
    %c0_3 = arith.constant 0 : index
    %3 = memref.load %arg3[%c0_3] : memref<1xf32, #tpu.memory_space<smem>>
    %4 = vector.broadcast %3 : f32 to vector<2x128xf32>
    %5 = arith.addf %2, %4 : vector<2x128xf32>
    %cst_4 = arith.constant 0.000000e+00 : f32
    %6 = vector.broadcast %cst_4 : f32 to vector<2x128xf32>
    %7 = arith.maximumf %5, %6 : vector<2x128xf32>
    %c0_5 = arith.constant 0 : index
    %c0_6 = arith.constant 0 : index
    %8 = vector.load %arg4[%c0_5, %c0_6] : memref<2x128xf32, #tpu.memory_space<vmem>>, vector<2x128xf32>
    tpu.vector_store %arg4[%c0_5, %c0_6], %7 {strides = array<i32>} : memref<2x128xf32, #tpu.memory_space<vmem>>, vector<2x128xf32>,
    return
  }
  func.func @transform_0(%arg0: i32) -> (i32, i32) {
    %c0_i32 = arith.constant 0 : i32
    %c0_i32_0 = arith.constant 0 : i32
    return %arg0, %c0_i32 : i32, i32
  }
  func.func @transform_1(%arg0: i32) -> (i32, i32) {
    %c0_i32 = arith.constant 0 : i32
    %c0_i32_0 = arith.constant 0 : i32
    %c0_i32_1 = arith.constant 0 : i32
    return %c0_i32, %c0_i32_0 : i32, i32
  }
  func.func @transform_2(%arg0: i32) -> i32 {
    %c0_i32 = arith.constant 0 : i32
    %c0_i32_0 = arith.constant 0 : i32
    return %c0_i32 : i32
  }
  func.func @transform_3(%arg0: i32) -> (i32, i32) {
    %c0_i32 = arith.constant 0 : i32
    %c0_i32_0 = arith.constant 0 : i32
    return %arg0, %c0_i32 : i32, i32
  }
}

</mosaic_0001>

<llo_original>
// kernel: linear_relu.1
$region0: #{linear_relu.1}
  #allocation0 [shape = 'u32[]', space=smem, size = 0x4, offset = 0x4, fixed_abs, tag = 'smem constant byte address 0x4 - core index']
  #allocation1 [shape = 'u32[72,128]{1,0:T(1,128)}', space=vmem, size = 0x9000, scoped, tag = 'internal scratch']
  #allocation2 [shape = 'f32[1]{0:T(128)S(6)}', space=smem, size = 0x200, scoped, tag = 'scoped memory for linear_relu.1']
  %s0 = inlined_call_operand.vmem [shape: f32[2,4864], index: 0, kind: input, shape index: {}]
  %s1 = inlined_call_operand.vmem [shape: f32[4864,128], index: 1, kind: input, shape index: {}]
  %s2 = inlined_call_operand.<no memory space> [shape: f32[1], index: 2, kind: input, shape index: {}]
  %s3 = inlined_call_operand.hbm [shape: f32[2,128], index: 3, kind: output, shape index: {}]
  %s4 = sld [smem:[#allocation0]]
  $region22: #{linear_relu.1} parent=0
    _
  %s6 = ssub.s32 1, %s4
  %s7 = scalar_select 0, %s6, %s4
  %8 = sst [smem:[#allocation2]] %s2
  $region1: #{linear_relu.1} parent=0
    #allocation3 [shape = 'u8[1024]{0}', space=vmem, size = 0x400, scoped, tag = 'output window, operand 0, single buffered']
    #allocation4 [shape = 's32[1]{0}', space=sflag, size = 0x4, scoped, tag = 'scoped memory for linear_relu.1']
    %9 = vsyncpa [#allocation4], 0
    // Predicated region
    $region2: #{linear_relu.1} parent=1 // pred_check
      _
    $region3: #{linear_relu.1} parent=1 // pred_check_branch
      %11 = sbr.rel (0) target = $region5
    $region4: #{linear_relu.1} parent=1 // pred_region
      _
    $region5: #{linear_relu.1} parent=1 // pred_fallthru
      _
    // Predicated region
    $region6: #{linear_relu.1} parent=1 // pred_check
      _
    $region7: #{linear_relu.1} parent=1 // pred_check_branch
      %13 = sbr.rel (0) target = $region9
    $region8: #{linear_relu.1} parent=1 // pred_region
      _
    $region9: #{linear_relu.1} parent=1 // pred_fallthru
      _
    // Predicated region
    $region10: #{linear_relu.1} parent=1 // pred_check
      _
    $region11: #{linear_relu.1} parent=1 // pred_check_branch
      %15 = sbr.rel (0) target = $region13
    $region12: #{linear_relu.1} parent=1 // pred_region
      _
    $region13: #{linear_relu.1} parent=1 // pred_fallthru
      _
    %v16 = vld [vmem:[%s0] sm:$0xff]
    %v17 = vld [vmem:[%s0 + $0x8] sm:$0xff]
    %v18 = vld [vmem:[%s0 + $0x10] sm:$0xff]
    %v19 = vld [vmem:[%s0 + $0x18] sm:$0xff]
    %v20 = vld [vmem:[%s0 + $0x20] sm:$0xff]
    %v21 = vld [vmem:[%s0 + $0x28] sm:$0xff]
    %v22 = vld [vmem:[%s0 + $0x30] sm:$0xff]
    %v23 = vld [vmem:[%s0 + $0x38] sm:$0xff]
    %v24 = vld [vmem:[%s0 + $0x40] sm:$0xff]
    %v25 = vld [vmem:[%s0 + $0x48] sm:$0xf]
    %v26 = vld [vmem:[%s1] sm:$0xff]
    %v27 = vld [vmem:[%s1 + $0x8] sm:$0xff]
    %v28 = vld [vmem:[%s1 + $0x10] sm:$0xff]
    %v29 = vld [vmem:[%s1 + $0x18] sm:$0xff]
    %v30 = vld [vmem:[%s1 + $0x20] sm:$0xff]
    %v31 = vld [vmem:[%s1 + $0x28] sm:$0xff]
    %v32 = vld [vmem:[%s1 + $0x30] sm:$0xff]
    %v33 = vld [vmem:[%s1 + $0x38] sm:$0xff]
    %v34 = vld [vmem:[%s1 + $0x40] sm:$0xff]
    %v35 = vld [vmem:[%s1 + $0x48] sm:$0xff]
    %v36 = vld [vmem:[%s1 + $0x50] sm:$0xff]
    %v37 = vld [vmem:[%s1 + $0x58] sm:$0xff]
    %v38 = vld [vmem:[%s1 + $0x60] sm:$0xff]
    %v39 = vld [vmem:[%s1 + $0x68] sm:$0xff]
    %v40 = vld [vmem:[%s1 + $0x70] sm:$0xff]
    %v41 = vld [vmem:[%s1 + $0x78] sm:$0xff]
    %v42 = vld [vmem:[%s1 + $0x80] sm:$0xff]
    %v43 = vld [vmem:[%s1 + $0x88] sm:$0xff]
    %v44 = vld [vmem:[%s1 + $0x90] sm:$0xff]
    %v45 = vld [vmem:[%s1 + $0x98] sm:$0xff]
    %v46 = vld [vmem:[%s1 + $0xa0] sm:$0xff]
    %v47 = vld [vmem:[%s1 + $0xa8] sm:$0xff]
    %v48 = vld [vmem:[%s1 + $0xb0] sm:$0xff]
    %v49 = vld [vmem:[%s1 + $0xb8] sm:$0xff]
    %v50 = vld [vmem:[%s1 + $0xc0] sm:$0xff]
    %v51 = vld [vmem:[%s1 + $0xc8] sm:$0xff]
    %v52 = vld [vmem:[%s1 + $0xd0] sm:$0xff]
    %v53 = vld [vmem:[%s1 + $0xd8] sm:$0xff]
    %v54 = vld [vmem:[%s1 + $0xe0] sm:$0xff]
    %v55 = vld [vmem:[%s1 + $0xe8] sm:$0xff]
    %v56 = vld [vmem:[%s1 + $0xf0] sm:$0xff]
    %v57 = vld [vmem:[%s1 + $0xf8] sm:$0xff]
    %v58 = vld [vmem:[%s1 + $0x100] sm:$0xff]
    %v59 = vld [vmem:[%s1 + $0x108] sm:$0xff]
    %v60 = vld [vmem:[%s1 + $0x110] sm:$0xff]
    %v61 = vld [vmem:[%s1 + $0x118] sm:$0xff]
    %v62 = vld [vmem:[%s1 + $0x120] sm:$0xff]
    %v63 = vld [vmem:[%s1 + $0x128] sm:$0xff]
    %v64 = vld [vmem:[%s1 + $0x130] sm:$0xff]
    %v65 = vld [vmem:[%s1 + $0x138] sm:$0xff]
    %v66 = vld [vmem:[%s1 + $0x140] sm:$0xff]
    %v67 = vld [vmem:[%s1 + $0x148] sm:$0xff]
    %v68 = vld [vmem:[%s1 + $0x150] sm:$0xff]
    %v69 = vld [vmem:[%s1 + $0x158] sm:$0xff]
    %v70 = vld [vmem:[%s1 + $0x160] sm:$0xff]
    %v71 = vld [vmem:[%s1 + $0x168] sm:$0xff]
    %v72 = vld [vmem:[%s1 + $0x170] sm:$0xff]
    %v73 = vld [vmem:[%s1 + $0x178] sm:$0xff]
    %v74 = vld [vmem:[%s1 + $0x180] sm:$0xff]
    %v75 = vld [vmem:[%s1 + $0x188] sm:$0xff]
    %v76 = vld [vmem:[%s1 + $0x190] sm:$0xff]
    %v77 = vld [vmem:[%s1 + $0x198] sm:$0xff]
    %v78 = vld [vmem:[%s1 + $0x1a0] sm:$0xff]
    %v79 = vld [vmem:[%s1 + $0x1a8] sm:$0xff]
    %v80 = vld [vmem:[%s1 + $0x1b0] sm:$0xff]
    %v81 = vld [vmem:[%s1 + $0x1b8] sm:$0xff]
    %v82 = vld [vmem:[%s1 + $0x1c0] sm:$0xff]
    %v83 = vld [vmem:[%s1 + $0x1c8] sm:$0xff]
    %v84 = vld [vmem:[%s1 + $0x1d0] sm:$0xff]
    %v85 = vld [vmem:[%s1 + $0x1d8] sm:$0xff]
    %v86 = vld [vmem:[%s1 + $0x1e0] sm:$0xff]
    %v87 = vld [vmem:[%s1 + $0x1e8] sm:$0xff]
    %v88 = vld [vmem:[%s1 + $0x1f0] sm:$0xff]
    %v89 = vld [vmem:[%s1 + $0x1f8] sm:$0xff]
    %v90 = vld [vmem:[%s1 + $0x200] sm:$0xff]
    %v91 = vld [vmem:[%s1 + $0x208] sm:$0xff]
    %v92 = vld [vmem:[%s1 + $0x210] sm:$0xff]
    %v93 = vld [vmem:[%s1 + $0x218] sm:$0xff]
    %v94 = vld [vmem:[%s1 + $0x220] sm:$0xff]
    %v95 = vld [vmem:[%s1 + $0x228] sm:$0xff]
    %v96 = vld [vmem:[%s1 + $0x230] sm:$0xff]
    %v97 = vld [vmem:[%s1 + $0x238] sm:$0xff]
    %v98 = vld [vmem:[%s1 + $0x240] sm:$0xff]
    %v99 = vld [vmem:[%s1 + $0x248] sm:$0xff]
    %v100 = vld [vmem:[%s1 + $0x250] sm:$0xff]
    %v101 = vld [vmem:[%s1 + $0x258] sm:$0xff]
    %v102 = vld [vmem:[%s1 + $0x260] sm:$0xff]
    %v103 = vld [vmem:[%s1 + $0x268] sm:$0xff]
    %v104 = vld [vmem:[%s1 + $0x270] sm:$0xff]
    %v105 = vld [vmem:[%s1 + $0x278] sm:$0xff]
    %v106 = vld [vmem:[%s1 + $0x280] sm:$0xff]
    %v107 = vld [vmem:[%s1 + $0x288] sm:$0xff]
    %v108 = vld [vmem:[%s1 + $0x290] sm:$0xff]
    %v109 = vld [vmem:[%s1 + $0x298] sm:$0xff]
    %v110 = vld [vmem:[%s1 + $0x2a0] sm:$0xff]
    %v111 = vld [vmem:[%s1 + $0x2a8] sm:$0xff]
    %v112 = vld [vmem:[%s1 + $0x2b0] sm:$0xff]
    %v113 = vld [vmem:[%s1 + $0x2b8] sm:$0xff]
    %v114 = vld [vmem:[%s1 + $0x2c0] sm:$0xff]
    %v115 = vld [vmem:[%s1 + $0x2c8] sm:$0xff]
    %v116 = vld [vmem:[%s1 + $0x2d0] sm:$0xff]
    %v117 = vld [vmem:[%s1 + $0x2d8] sm:$0xff]
    %v118 = vld [vmem:[%s1 + $0x2e0] sm:$0xff]
    %v119 = vld [vmem:[%s1 + $0x2e8] sm:$0xff]
    %v120 = vld [vmem:[%s1 + $0x2f0] sm:$0xff]
    %v121 = vld [vmem:[%s1 + $0x2f8] sm:$0xff]
    %v122 = vld [vmem:[%s1 + $0x300] sm:$0xff]
    %v123 = vld [vmem:[%s1 + $0x308] sm:$0xff]
    %v124 = vld [vmem:[%s1 + $0x310] sm:$0xff]
    %v125 = vld [vmem:[%s1 + $0x318] sm:$0xff]
    %v126 = vld [vmem:[%s1 + $0x320] sm:$0xff]
    %v127 = vld [vmem:[%s1 + $0x328] sm:$0xff]
    %v128 = vld [vmem:[%s1 + $0x330] sm:$0xff]
    %v129 = vld [vmem:[%s1 + $0x338] sm:$0xff]
    %v130 = vld [vmem:[%s1 + $0x340] sm:$0xff]
    %v131 = vld [vmem:[%s1 + $0x348] sm:$0xff]
    %v132 = vld [vmem:[%s1 + $0x350] sm:$0xff]
    %v133 = vld [vmem:[%s1 + $0x358] sm:$0xff]
    %v134 = vld [vmem:[%s1 + $0x360] sm:$0xff]
    %v135 = vld [vmem:[%s1 + $0x368] sm:$0xff]
    %v136 = vld [vmem:[%s1 + $0x370] sm:$0xff]
    %v137 = vld [vmem:[%s1 + $0x378] sm:$0xff]
    %v138 = vld [vmem:[%s1 + $0x380] sm:$0xff]
    %v139 = vld [vmem:[%s1 + $0x388] sm:$0xff]
    %v140 = vld [vmem:[%s1 + $0x390] sm:$0xff]
    %v141 = vld [vmem:[%s1 + $0x398] sm:$0xff]
    %v142 = vld [vmem:[%s1 + $0x3a0] sm:$0xff]
    %v143 = vld [vmem:[%s1 + $0x3a8] sm:$0xff]
    %v144 = vld [vmem:[%s1 + $0x3b0] sm:$0xff]
    %v145 = vld [vmem:[%s1 + $0x3b8] sm:$0xff]
    %v146 = vld [vmem:[%s1 + $0x3c0] sm:$0xff]
    %v147 = vld [vmem:[%s1 + $0x3c8] sm:$0xff]
    %v148 = vld [vmem:[%s1 + $0x3d0] sm:$0xff]
    %v149 = vld [vmem:[%s1 + $0x3d8] sm:$0xff]
    %v150 = vld [vmem:[%s1 + $0x3e0] sm:$0xff]
    %v151 = vld [vmem:[%s1 + $0x3e8] sm:$0xff]
    %v152 = vld [vmem:[%s1 + $0x3f0] sm:$0xff]
    %v153 = vld [vmem:[%s1 + $0x3f8] sm:$0xff]
    %v154 = vld [vmem:[%s1 + $0x400] sm:$0xff]
    %v155 = vld [vmem:[%s1 + $0x408] sm:$0xff]
    %v156 = vld [vmem:[%s1 + $0x410] sm:$0xff]
    %v157 = vld [vmem:[%s1 + $0x418] sm:$0xff]
    %v158 = vld [vmem:[%s1 + $0x420] sm:$0xff]
    %v159 = vld [vmem:[%s1 + $0x428] sm:$0xff]
    %v160 = vld [vmem:[%s1 + $0x430] sm:$0xff]
    %v161 = vld [vmem:[%s1 + $0x438] sm:$0xff]
    %v162 = vld [vmem:[%s1 + $0x440] sm:$0xff]
    %v163 = vld [vmem:[%s1 + $0x448] sm:$0xff]
    %v164 = vld [vmem:[%s1 + $0x450] sm:$0xff]
    %v165 = vld [vmem:[%s1 + $0x458] sm:$0xff]
    %v166 = vld [vmem:[%s1 + $0x460] sm:$0xff]
    %v167 = vld [vmem:[%s1 + $0x468] sm:$0xff]
    %v168 = vld [vmem:[%s1 + $0x470] sm:$0xff]
    %v169 = vld [vmem:[%s1 + $0x478] sm:$0xff]
    %v170 = vld [vmem:[%s1 + $0x480] sm:$0xff]
    %v171 = vld [vmem:[%s1 + $0x488] sm:$0xff]
    %v172 = vld [vmem:[%s1 + $0x490] sm:$0xff]
    %v173 = vld [vmem:[%s1 + $0x498] sm:$0xff]
    %v174 = vld [vmem:[%s1 + $0x4a0] sm:$0xff]
    %v175 = vld [vmem:[%s1 + $0x4a8] sm:$0xff]
    %v176 = vld [vmem:[%s1 + $0x4b0] sm:$0xff]
    %v177 = vld [vmem:[%s1 + $0x4b8] sm:$0xff]
    %v178 = vld [vmem:[%s1 + $0x4c0] sm:$0xff]
    %v179 = vld [vmem:[%s1 + $0x4c8] sm:$0xff]
    %v180 = vld [vmem:[%s1 + $0x4d0] sm:$0xff]
    %v181 = vld [vmem:[%s1 + $0x4d8] sm:$0xff]
    %v182 = vld [vmem:[%s1 + $0x4e0] sm:$0xff]
    %v183 = vld [vmem:[%s1 + $0x4e8] sm:$0xff]
    %v184 = vld [vmem:[%s1 + $0x4f0] sm:$0xff]
    %v185 = vld [vmem:[%s1 + $0x4f8] sm:$0xff]
    %v186 = vld [vmem:[%s1 + $0x500] sm:$0xff]
    %v187 = vld [vmem:[%s1 + $0x508] sm:$0xff]
    %v188 = vld [vmem:[%s1 + $0x510] sm:$0xff]
    %v189 = vld [vmem:[%s1 + $0x518] sm:$0xff]
    %v190 = vld [vmem:[%s1 + $0x520] sm:$0xff]
    %v191 = vld [vmem:[%s1 + $0x528] sm:$0xff]
    %v192 = vld [vmem:[%s1 + $0x530] sm:$0xff]
    %v193 = vld [vmem:[%s1 + $0x538] sm:$0xff]
    %v194 = vld [vmem:[%s1 + $0x540] sm:$0xff]
    %v195 = vld [vmem:[%s1 + $0x548] sm:$0xff]
    %v196 = vld [vmem:[%s1 + $0x550] sm:$0xff]
    %v197 = vld [vmem:[%s1 + $0x558] sm:$0xff]
    %v198 = vld [vmem:[%s1 + $0x560] sm:$0xff]
    %v199 = vld [vmem:[%s1 + $0x568] sm:$0xff]
    %v200 = vld [vmem:[%s1 + $0x570] sm:$0xff]
    %v201 = vld [vmem:[%s1 + $0x578] sm:$0xff]
    %v202 = vld [vmem:[%s1 + $0x580] sm:$0xff]
    %v203 = vld [vmem:[%s1 + $0x588] sm:$0xff]
    %v204 = vld [vmem:[%s1 + $0x590] sm:$0xff]
    %v205 = vld [vmem:[%s1 + $0x598] sm:$0xff]
    %v206 = vld [vmem:[%s1 + $0x5a0] sm:$0xff]
    %v207 = vld [vmem:[%s1 + $0x5a8] sm:$0xff]
    %v208 = vld [vmem:[%s1 + $0x5b0] sm:$0xff]
    %v209 = vld [vmem:[%s1 + $0x5b8] sm:$0xff]
    %v210 = vld [vmem:[%s1 + $0x5c0] sm:$0xff]
    %v211 = vld [vmem:[%s1 + $0x5c8] sm:$0xff]
    %v212 = vld [vmem:[%s1 + $0x5d0] sm:$0xff]
    %v213 = vld [vmem:[%s1 + $0x5d8] sm:$0xff]
    %v214 = vld [vmem:[%s1 + $0x5e0] sm:$0xff]
    %v215 = vld [vmem:[%s1 + $0x5e8] sm:$0xff]
    %v216 = vld [vmem:[%s1 + $0x5f0] sm:$0xff]
    %v217 = vld [vmem:[%s1 + $0x5f8] sm:$0xff]
    %v218 = vld [vmem:[%s1 + $0x600] sm:$0xff]
    %v219 = vld [vmem:[%s1 + $0x608] sm:$0xff]
    %v220 = vld [vmem:[%s1 + $0x610] sm:$0xff]
    %v221 = vld [vmem:[%s1 + $0x618] sm:$0xff]
    %v222 = vld [vmem:[%s1 + $0x620] sm:$0xff]
    %v223 = vld [vmem:[%s1 + $0x628] sm:$0xff]
    %v224 = vld [vmem:[%s1 + $0x630] sm:$0xff]
    %v225 = vld [vmem:[%s1 + $0x638] sm:$0xff]
    %v226 = vld [vmem:[%s1 + $0x640] sm:$0xff]
    %v227 = vld [vmem:[%s1 + $0x648] sm:$0xff]
    %v228 = vld [vmem:[%s1 + $0x650] sm:$0xff]
    %v229 = vld [vmem:[%s1 + $0x658] sm:$0xff]
    %v230 = vld [vmem:[%s1 + $0x660] sm:$0xff]
    %v231 = vld [vmem:[%s1 + $0x668] sm:$0xff]
    %v232 = vld [vmem:[%s1 + $0x670] sm:$0xff]
    %v233 = vld [vmem:[%s1 + $0x678] sm:$0xff]
    %v234 = vld [vmem:[%s1 + $0x680] sm:$0xff]
    %v235 = vld [vmem:[%s1 + $0x688] sm:$0xff]
    %v236 = vld [vmem:[%s1 + $0x690] sm:$0xff]
    %v237 = vld [vmem:[%s1 + $0x698] sm:$0xff]
    %v238 = vld [vmem:[%s1 + $0x6a0] sm:$0xff]
    %v239 = vld [vmem:[%s1 + $0x6a8] sm:$0xff]
    %v240 = vld [vmem:[%s1 + $0x6b0] sm:$0xff]
    %v241 = vld [vmem:[%s1 + $0x6b8] sm:$0xff]
    %v242 = vld [vmem:[%s1 + $0x6c0] sm:$0xff]
    %v243 = vld [vmem:[%s1 + $0x6c8] sm:$0xff]
    %v244 = vld [vmem:[%s1 + $0x6d0] sm:$0xff]
    %v245 = vld [vmem:[%s1 + $0x6d8] sm:$0xff]
    %v246 = vld [vmem:[%s1 + $0x6e0] sm:$0xff]
    %v247 = vld [vmem:[%s1 + $0x6e8] sm:$0xff]
    %v248 = vld [vmem:[%s1 + $0x6f0] sm:$0xff]
    %v249 = vld [vmem:[%s1 + $0x6f8] sm:$0xff]
    %v250 = vld [vmem:[%s1 + $0x700] sm:$0xff]
    %v251 = vld [vmem:[%s1 + $0x708] sm:$0xff]
    %v252 = vld [vmem:[%s1 + $0x710] sm:$0xff]
    %v253 = vld [vmem:[%s1 + $0x718] sm:$0xff]
    %v254 = vld [vmem:[%s1 + $0x720] sm:$0xff]
    %v255 = vld [vmem:[%s1 + $0x728] sm:$0xff]
    %v256 = vld [vmem:[%s1 + $0x730] sm:$0xff]
    %v257 = vld [vmem:[%s1 + $0x738] sm:$0xff]
    %v258 = vld [vmem:[%s1 + $0x740] sm:$0xff]
    %v259 = vld [vmem:[%s1 + $0x748] sm:$0xff]
    %v260 = vld [vmem:[%s1 + $0x750] sm:$0xff]
    %v261 = vld [vmem:[%s1 + $0x758] sm:$0xff]
    %v262 = vld [vmem:[%s1 + $0x760] sm:$0xff]
    %v263 = vld [vmem:[%s1 + $0x768] sm:$0xff]
    %v264 = vld [vmem:[%s1 + $0x770] sm:$0xff]
    %v265 = vld [vmem:[%s1 + $0x778] sm:$0xff]
    %v266 = vld [vmem:[%s1 + $0x780] sm:$0xff]
    %v267 = vld [vmem:[%s1 + $0x788] sm:$0xff]
    %v268 = vld [vmem:[%s1 + $0x790] sm:$0xff]
    %v269 = vld [vmem:[%s1 + $0x798] sm:$0xff]
    %v270 = vld [vmem:[%s1 + $0x7a0] sm:$0xff]
    %v271 = vld [vmem:[%s1 + $0x7a8] sm:$0xff]
    %v272 = vld [vmem:[%s1 + $0x7b0] sm:$0xff]
    %v273 = vld [vmem:[%s1 + $0x7b8] sm:$0xff]
    %v274 = vld [vmem:[%s1 + $0x7c0] sm:$0xff]
    %v275 = vld [vmem:[%s1 + $0x7c8] sm:$0xff]
    %v276 = vld [vmem:[%s1 + $0x7d0] sm:$0xff]
    %v277 = vld [vmem:[%s1 + $0x7d8] sm:$0xff]
    %v278 = vld [vmem:[%s1 + $0x7e0] sm:$0xff]
    %v279 = vld [vmem:[%s1 + $0x7e8] sm:$0xff]
    %v280 = vld [vmem:[%s1 + $0x7f0] sm:$0xff]
    %v281 = vld [vmem:[%s1 + $0x7f8] sm:$0xff]
    %v282 = vld [vmem:[%s1 + $0x800] sm:$0xff]
    %v283 = vld [vmem:[%s1 + $0x808] sm:$0xff]
    %v284 = vld [vmem:[%s1 + $0x810] sm:$0xff]
    %v285 = vld [vmem:[%s1 + $0x818] sm:$0xff]
    %v286 = vld [vmem:[%s1 + $0x820] sm:$0xff]
    %v287 = vld [vmem:[%s1 + $0x828] sm:$0xff]
    %v288 = vld [vmem:[%s1 + $0x830] sm:$0xff]
    %v289 = vld [vmem:[%s1 + $0x838] sm:$0xff]
    %v290 = vld [vmem:[%s1 + $0x840] sm:$0xff]
    %v291 = vld [vmem:[%s1 + $0x848] sm:$0xff]
    %v292 = vld [vmem:[%s1 + $0x850] sm:$0xff]
    %v293 = vld [vmem:[%s1 + $0x858] sm:$0xff]
    %v294 = vld [vmem:[%s1 + $0x860] sm:$0xff]
    %v295 = vld [vmem:[%s1 + $0x868] sm:$0xff]
    %v296 = vld [vmem:[%s1 + $0x870] sm:$0xff]
    %v297 = vld [vmem:[%s1 + $0x878] sm:$0xff]
    %v298 = vld [vmem:[%s1 + $0x880] sm:$0xff]
    %v299 = vld [vmem:[%s1 + $0x888] sm:$0xff]
    %v300 = vld [vmem:[%s1 + $0x890] sm:$0xff]
    %v301 = vld [vmem:[%s1 + $0x898] sm:$0xff]
    %v302 = vld [vmem:[%s1 + $0x8a0] sm:$0xff]
    %v303 = vld [vmem:[%s1 + $0x8a8] sm:$0xff]
    %v304 = vld [vmem:[%s1 + $0x8b0] sm:$0xff]
    %v305 = vld [vmem:[%s1 + $0x8b8] sm:$0xff]
    %v306 = vld [vmem:[%s1 + $0x8c0] sm:$0xff]
    %v307 = vld [vmem:[%s1 + $0x8c8] sm:$0xff]
    %v308 = vld [vmem:[%s1 + $0x8d0] sm:$0xff]
    %v309 = vld [vmem:[%s1 + $0x8d8] sm:$0xff]
    %v310 = vld [vmem:[%s1 + $0x8e0] sm:$0xff]
    %v311 = vld [vmem:[%s1 + $0x8e8] sm:$0xff]
    %v312 = vld [vmem:[%s1 + $0x8f0] sm:$0xff]
    %v313 = vld [vmem:[%s1 + $0x8f8] sm:$0xff]
    %v314 = vld [vmem:[%s1 + $0x900] sm:$0xff]
    %v315 = vld [vmem:[%s1 + $0x908] sm:$0xff]
    %v316 = vld [vmem:[%s1 + $0x910] sm:$0xff]
    %v317 = vld [vmem:[%s1 + $0x918] sm:$0xff]
    %v318 = vld [vmem:[%s1 + $0x920] sm:$0xff]
    %v319 = vld [vmem:[%s1 + $0x928] sm:$0xff]
    %v320 = vld [vmem:[%s1 + $0x930] sm:$0xff]
    %v321 = vld [vmem:[%s1 + $0x938] sm:$0xff]
    %v322 = vld [vmem:[%s1 + $0x940] sm:$0xff]
    %v323 = vld [vmem:[%s1 + $0x948] sm:$0xff]
    %v324 = vld [vmem:[%s1 + $0x950] sm:$0xff]
    %v325 = vld [vmem:[%s1 + $0x958] sm:$0xff]
    %v326 = vld [vmem:[%s1 + $0x960] sm:$0xff]
    %v327 = vld [vmem:[%s1 + $0x968] sm:$0xff]
    %v328 = vld [vmem:[%s1 + $0x970] sm:$0xff]
    %v329 = vld [vmem:[%s1 + $0x978] sm:$0xff]
    %v330 = vld [vmem:[%s1 + $0x980] sm:$0xff]
    %v331 = vld [vmem:[%s1 + $0x988] sm:$0xff]
    %v332 = vld [vmem:[%s1 + $0x990] sm:$0xff]
    %v333 = vld [vmem:[%s1 + $0x998] sm:$0xff]
    %v334 = vld [vmem:[%s1 + $0x9a0] sm:$0xff]
    %v335 = vld [vmem:[%s1 + $0x9a8] sm:$0xff]
    %v336 = vld [vmem:[%s1 + $0x9b0] sm:$0xff]
    %v337 = vld [vmem:[%s1 + $0x9b8] sm:$0xff]
    %v338 = vld [vmem:[%s1 + $0x9c0] sm:$0xff]
    %v339 = vld [vmem:[%s1 + $0x9c8] sm:$0xff]
    %v340 = vld [vmem:[%s1 + $0x9d0] sm:$0xff]
    %v341 = vld [vmem:[%s1 + $0x9d8] sm:$0xff]
    %v342 = vld [vmem:[%s1 + $0x9e0] sm:$0xff]
    %v343 = vld [vmem:[%s1 + $0x9e8] sm:$0xff]
    %v344 = vld [vmem:[%s1 + $0x9f0] sm:$0xff]
    %v345 = vld [vmem:[%s1 + $0x9f8] sm:$0xff]
    %v346 = vld [vmem:[%s1 + $0xa00] sm:$0xff]
    %v347 = vld [vmem:[%s1 + $0xa08] sm:$0xff]
    %v348 = vld [vmem:[%s1 + $0xa10] sm:$0xff]
    %v349 = vld [vmem:[%s1 + $0xa18] sm:$0xff]
    %v350 = vld [vmem:[%s1 + $0xa20] sm:$0xff]
    %v351 = vld [vmem:[%s1 + $0xa28] sm:$0xff]
    %v352 = vld [vmem:[%s1 + $0xa30] sm:$0xff]
    %v353 = vld [vmem:[%s1 + $0xa38] sm:$0xff]
    %v354 = vld [vmem:[%s1 + $0xa40] sm:$0xff]
    %v355 = vld [vmem:[%s1 + $0xa48] sm:$0xff]
    %v356 = vld [vmem:[%s1 + $0xa50] sm:$0xff]
    %v357 = vld [vmem:[%s1 + $0xa58] sm:$0xff]
    %v358 = vld [vmem:[%s1 + $0xa60] sm:$0xff]
    %v359 = vld [vmem:[%s1 + $0xa68] sm:$0xff]
    %v360 = vld [vmem:[%s1 + $0xa70] sm:$0xff]
    %v361 = vld [vmem:[%s1 + $0xa78] sm:$0xff]
    %v362 = vld [vmem:[%s1 + $0xa80] sm:$0xff]
    %v363 = vld [vmem:[%s1 + $0xa88] sm:$0xff]
    %v364 = vld [vmem:[%s1 + $0xa90] sm:$0xff]
    %v365 = vld [vmem:[%s1 + $0xa98] sm:$0xff]
    %v366 = vld [vmem:[%s1 + $0xaa0] sm:$0xff]
    %v367 = vld [vmem:[%s1 + $0xaa8] sm:$0xff]
    %v368 = vld [vmem:[%s1 + $0xab0] sm:$0xff]
    %v369 = vld [vmem:[%s1 + $0xab8] sm:$0xff]
    %v370 = vld [vmem:[%s1 + $0xac0] sm:$0xff]
    %v371 = vld [vmem:[%s1 + $0xac8] sm:$0xff]
    %v372 = vld [vmem:[%s1 + $0xad0] sm:$0xff]
    %v373 = vld [vmem:[%s1 + $0xad8] sm:$0xff]
    %v374 = vld [vmem:[%s1 + $0xae0] sm:$0xff]
    %v375 = vld [vmem:[%s1 + $0xae8] sm:$0xff]
    %v376 = vld [vmem:[%s1 + $0xaf0] sm:$0xff]
    %v377 = vld [vmem:[%s1 + $0xaf8] sm:$0xff]
    %v378 = vld [vmem:[%s1 + $0xb00] sm:$0xff]
    %v379 = vld [vmem:[%s1 + $0xb08] sm:$0xff]
    %v380 = vld [vmem:[%s1 + $0xb10] sm:$0xff]
    %v381 = vld [vmem:[%s1 + $0xb18] sm:$0xff]
    %v382 = vld [vmem:[%s1 + $0xb20] sm:$0xff]
    %v383 = vld [vmem:[%s1 + $0xb28] sm:$0xff]
    %v384 = vld [vmem:[%s1 + $0xb30] sm:$0xff]
    %v385 = vld [vmem:[%s1 + $0xb38] sm:$0xff]
    %v386 = vld [vmem:[%s1 + $0xb40] sm:$0xff]
    %v387 = vld [vmem:[%s1 + $0xb48] sm:$0xff]
    %v388 = vld [vmem:[%s1 + $0xb50] sm:$0xff]
    %v389 = vld [vmem:[%s1 + $0xb58] sm:$0xff]
    %v390 = vld [vmem:[%s1 + $0xb60] sm:$0xff]
    %v391 = vld [vmem:[%s1 + $0xb68] sm:$0xff]
    %v392 = vld [vmem:[%s1 + $0xb70] sm:$0xff]
    %v393 = vld [vmem:[%s1 + $0xb78] sm:$0xff]
    %v394 = vld [vmem:[%s1 + $0xb80] sm:$0xff]
    %v395 = vld [vmem:[%s1 + $0xb88] sm:$0xff]
    %v396 = vld [vmem:[%s1 + $0xb90] sm:$0xff]
    %v397 = vld [vmem:[%s1 + $0xb98] sm:$0xff]
    %v398 = vld [vmem:[%s1 + $0xba0] sm:$0xff]
    %v399 = vld [vmem:[%s1 + $0xba8] sm:$0xff]
    %v400 = vld [vmem:[%s1 + $0xbb0] sm:$0xff]
    %v401 = vld [vmem:[%s1 + $0xbb8] sm:$0xff]
    %v402 = vld [vmem:[%s1 + $0xbc0] sm:$0xff]
    %v403 = vld [vmem:[%s1 + $0xbc8] sm:$0xff]
    %v404 = vld [vmem:[%s1 + $0xbd0] sm:$0xff]
    %v405 = vld [vmem:[%s1 + $0xbd8] sm:$0xff]
    %v406 = vld [vmem:[%s1 + $0xbe0] sm:$0xff]
    %v407 = vld [vmem:[%s1 + $0xbe8] sm:$0xff]
    %v408 = vld [vmem:[%s1 + $0xbf0] sm:$0xff]
    %v409 = vld [vmem:[%s1 + $0xbf8] sm:$0xff]
    %v410 = vld [vmem:[%s1 + $0xc00] sm:$0xff]
    %v411 = vld [vmem:[%s1 + $0xc08] sm:$0xff]
    %v412 = vld [vmem:[%s1 + $0xc10] sm:$0xff]
    %v413 = vld [vmem:[%s1 + $0xc18] sm:$0xff]
    %v414 = vld [vmem:[%s1 + $0xc20] sm:$0xff]
    %v415 = vld [vmem:[%s1 + $0xc28] sm:$0xff]
    %v416 = vld [vmem:[%s1 + $0xc30] sm:$0xff]
    %v417 = vld [vmem:[%s1 + $0xc38] sm:$0xff]
    %v418 = vld [vmem:[%s1 + $0xc40] sm:$0xff]
    %v419 = vld [vmem:[%s1 + $0xc48] sm:$0xff]
    %v420 = vld [vmem:[%s1 + $0xc50] sm:$0xff]
    %v421 = vld [vmem:[%s1 + $0xc58] sm:$0xff]
    %v422 = vld [vmem:[%s1 + $0xc60] sm:$0xff]
    %v423 = vld [vmem:[%s1 + $0xc68] sm:$0xff]
    %v424 = vld [vmem:[%s1 + $0xc70] sm:$0xff]
    %v425 = vld [vmem:[%s1 + $0xc78] sm:$0xff]
    %v426 = vld [vmem:[%s1 + $0xc80] sm:$0xff]
    %v427 = vld [vmem:[%s1 + $0xc88] sm:$0xff]
    %v428 = vld [vmem:[%s1 + $0xc90] sm:$0xff]
    %v429 = vld [vmem:[%s1 + $0xc98] sm:$0xff]
    %v430 = vld [vmem:[%s1 + $0xca0] sm:$0xff]
    %v431 = vld [vmem:[%s1 + $0xca8] sm:$0xff]
    %v432 = vld [vmem:[%s1 + $0xcb0] sm:$0xff]
    %v433 = vld [vmem:[%s1 + $0xcb8] sm:$0xff]
    %v434 = vld [vmem:[%s1 + $0xcc0] sm:$0xff]
    %v435 = vld [vmem:[%s1 + $0xcc8] sm:$0xff]
    %v436 = vld [vmem:[%s1 + $0xcd0] sm:$0xff]
    %v437 = vld [vmem:[%s1 + $0xcd8] sm:$0xff]
    %v438 = vld [vmem:[%s1 + $0xce0] sm:$0xff]
    %v439 = vld [vmem:[%s1 + $0xce8] sm:$0xff]
    %v440 = vld [vmem:[%s1 + $0xcf0] sm:$0xff]
    %v441 = vld [vmem:[%s1 + $0xcf8] sm:$0xff]
    %v442 = vld [vmem:[%s1 + $0xd00] sm:$0xff]
    %v443 = vld [vmem:[%s1 + $0xd08] sm:$0xff]
    %v444 = vld [vmem:[%s1 + $0xd10] sm:$0xff]
    %v445 = vld [vmem:[%s1 + $0xd18] sm:$0xff]
    %v446 = vld [vmem:[%s1 + $0xd20] sm:$0xff]
    %v447 = vld [vmem:[%s1 + $0xd28] sm:$0xff]
    %v448 = vld [vmem:[%s1 + $0xd30] sm:$0xff]
    %v449 = vld [vmem:[%s1 + $0xd38] sm:$0xff]
    %v450 = vld [vmem:[%s1 + $0xd40] sm:$0xff]
    %v451 = vld [vmem:[%s1 + $0xd48] sm:$0xff]
    %v452 = vld [vmem:[%s1 + $0xd50] sm:$0xff]
    %v453 = vld [vmem:[%s1 + $0xd58] sm:$0xff]
    %v454 = vld [vmem:[%s1 + $0xd60] sm:$0xff]
    %v455 = vld [vmem:[%s1 + $0xd68] sm:$0xff]
    %v456 = vld [vmem:[%s1 + $0xd70] sm:$0xff]
    %v457 = vld [vmem:[%s1 + $0xd78] sm:$0xff]
    %v458 = vld [vmem:[%s1 + $0xd80] sm:$0xff]
    %v459 = vld [vmem:[%s1 + $0xd88] sm:$0xff]
    %v460 = vld [vmem:[%s1 + $0xd90] sm:$0xff]
    %v461 = vld [vmem:[%s1 + $0xd98] sm:$0xff]
    %v462 = vld [vmem:[%s1 + $0xda0] sm:$0xff]
    %v463 = vld [vmem:[%s1 + $0xda8] sm:$0xff]
    %v464 = vld [vmem:[%s1 + $0xdb0] sm:$0xff]
    %v465 = vld [vmem:[%s1 + $0xdb8] sm:$0xff]
    %v466 = vld [vmem:[%s1 + $0xdc0] sm:$0xff]
    %v467 = vld [vmem:[%s1 + $0xdc8] sm:$0xff]
    %v468 = vld [vmem:[%s1 + $0xdd0] sm:$0xff]
    %v469 = vld [vmem:[%s1 + $0xdd8] sm:$0xff]
    %v470 = vld [vmem:[%s1 + $0xde0] sm:$0xff]
    %v471 = vld [vmem:[%s1 + $0xde8] sm:$0xff]
    %v472 = vld [vmem:[%s1 + $0xdf0] sm:$0xff]
    %v473 = vld [vmem:[%s1 + $0xdf8] sm:$0xff]
    %v474 = vld [vmem:[%s1 + $0xe00] sm:$0xff]
    %v475 = vld [vmem:[%s1 + $0xe08] sm:$0xff]
    %v476 = vld [vmem:[%s1 + $0xe10] sm:$0xff]
    %v477 = vld [vmem:[%s1 + $0xe18] sm:$0xff]
    %v478 = vld [vmem:[%s1 + $0xe20] sm:$0xff]
    %v479 = vld [vmem:[%s1 + $0xe28] sm:$0xff]
    %v480 = vld [vmem:[%s1 + $0xe30] sm:$0xff]
    %v481 = vld [vmem:[%s1 + $0xe38] sm:$0xff]
    %v482 = vld [vmem:[%s1 + $0xe40] sm:$0xff]
    %v483 = vld [vmem:[%s1 + $0xe48] sm:$0xff]
    %v484 = vld [vmem:[%s1 + $0xe50] sm:$0xff]
    %v485 = vld [vmem:[%s1 + $0xe58] sm:$0xff]
    %v486 = vld [vmem:[%s1 + $0xe60] sm:$0xff]
    %v487 = vld [vmem:[%s1 + $0xe68] sm:$0xff]
    %v488 = vld [vmem:[%s1 + $0xe70] sm:$0xff]
    %v489 = vld [vmem:[%s1 + $0xe78] sm:$0xff]
    %v490 = vld [vmem:[%s1 + $0xe80] sm:$0xff]
    %v491 = vld [vmem:[%s1 + $0xe88] sm:$0xff]
    %v492 = vld [vmem:[%s1 + $0xe90] sm:$0xff]
    %v493 = vld [vmem:[%s1 + $0xe98] sm:$0xff]
    %v494 = vld [vmem:[%s1 + $0xea0] sm:$0xff]
    %v495 = vld [vmem:[%s1 + $0xea8] sm:$0xff]
    %v496 = vld [vmem:[%s1 + $0xeb0] sm:$0xff]
    %v497 = vld [vmem:[%s1 + $0xeb8] sm:$0xff]
    %v498 = vld [vmem:[%s1 + $0xec0] sm:$0xff]
    %v499 = vld [vmem:[%s1 + $0xec8] sm:$0xff]
    %v500 = vld [vmem:[%s1 + $0xed0] sm:$0xff]
    %v501 = vld [vmem:[%s1 + $0xed8] sm:$0xff]
    %v502 = vld [vmem:[%s1 + $0xee0] sm:$0xff]
    %v503 = vld [vmem:[%s1 + $0xee8] sm:$0xff]
    %v504 = vld [vmem:[%s1 + $0xef0] sm:$0xff]
    %v505 = vld [vmem:[%s1 + $0xef8] sm:$0xff]
    %v506 = vld [vmem:[%s1 + $0xf00] sm:$0xff]
    %v507 = vld [vmem:[%s1 + $0xf08] sm:$0xff]
    %v508 = vld [vmem:[%s1 + $0xf10] sm:$0xff]
    %v509 = vld [vmem:[%s1 + $0xf18] sm:$0xff]
    %v510 = vld [vmem:[%s1 + $0xf20] sm:$0xff]
    %v511 = vld [vmem:[%s1 + $0xf28] sm:$0xff]
    %v512 = vld [vmem:[%s1 + $0xf30] sm:$0xff]
    %v513 = vld [vmem:[%s1 + $0xf38] sm:$0xff]
    %v514 = vld [vmem:[%s1 + $0xf40] sm:$0xff]
    %v515 = vld [vmem:[%s1 + $0xf48] sm:$0xff]
    %v516 = vld [vmem:[%s1 + $0xf50] sm:$0xff]
    %v517 = vld [vmem:[%s1 + $0xf58] sm:$0xff]
    %v518 = vld [vmem:[%s1 + $0xf60] sm:$0xff]
    %v519 = vld [vmem:[%s1 + $0xf68] sm:$0xff]
    %v520 = vld [vmem:[%s1 + $0xf70] sm:$0xff]
    %v521 = vld [vmem:[%s1 + $0xf78] sm:$0xff]
    %v522 = vld [vmem:[%s1 + $0xf80] sm:$0xff]
    %v523 = vld [vmem:[%s1 + $0xf88] sm:$0xff]
    %v524 = vld [vmem:[%s1 + $0xf90] sm:$0xff]
    %v525 = vld [vmem:[%s1 + $0xf98] sm:$0xff]
    %v526 = vld [vmem:[%s1 + $0xfa0] sm:$0xff]
    %v527 = vld [vmem:[%s1 + $0xfa8] sm:$0xff]
    %v528 = vld [vmem:[%s1 + $0xfb0] sm:$0xff]
    %v529 = vld [vmem:[%s1 + $0xfb8] sm:$0xff]
    %v530 = vld [vmem:[%s1 + $0xfc0] sm:$0xff]
    %v531 = vld [vmem:[%s1 + $0xfc8] sm:$0xff]
    %v532 = vld [vmem:[%s1 + $0xfd0] sm:$0xff]
    %v533 = vld [vmem:[%s1 + $0xfd8] sm:$0xff]
    %v534 = vld [vmem:[%s1 + $0xfe0] sm:$0xff]
    %v535 = vld [vmem:[%s1 + $0xfe8] sm:$0xff]
    %v536 = vld [vmem:[%s1 + $0xff0] sm:$0xff]
    %v537 = vld [vmem:[%s1 + $0xff8] sm:$0xff]
    %v538 = vld [vmem:[%s1 + $0x1000] sm:$0xff]
    %v539 = vld [vmem:[%s1 + $0x1008] sm:$0xff]
    %v540 = vld [vmem:[%s1 + $0x1010] sm:$0xff]
    %v541 = vld [vmem:[%s1 + $0x1018] sm:$0xff]
    %v542 = vld [vmem:[%s1 + $0x1020] sm:$0xff]
    %v543 = vld [vmem:[%s1 + $0x1028] sm:$0xff]
    %v544 = vld [vmem:[%s1 + $0x1030] sm:$0xff]
    %v545 = vld [vmem:[%s1 + $0x1038] sm:$0xff]
    %v546 = vld [vmem:[%s1 + $0x1040] sm:$0xff]
    %v547 = vld [vmem:[%s1 + $0x1048] sm:$0xff]
    %v548 = vld [vmem:[%s1 + $0x1050] sm:$0xff]
    %v549 = vld [vmem:[%s1 + $0x1058] sm:$0xff]
    %v550 = vld [vmem:[%s1 + $0x1060] sm:$0xff]
    %v551 = vld [vmem:[%s1 + $0x1068] sm:$0xff]
    %v552 = vld [vmem:[%s1 + $0x1070] sm:$0xff]
    %v553 = vld [vmem:[%s1 + $0x1078] sm:$0xff]
    %v554 = vld [vmem:[%s1 + $0x1080] sm:$0xff]
    %v555 = vld [vmem:[%s1 + $0x1088] sm:$0xff]
    %v556 = vld [vmem:[%s1 + $0x1090] sm:$0xff]
    %v557 = vld [vmem:[%s1 + $0x1098] sm:$0xff]
    %v558 = vld [vmem:[%s1 + $0x10a0] sm:$0xff]
    %v559 = vld [vmem:[%s1 + $0x10a8] sm:$0xff]
    %v560 = vld [vmem:[%s1 + $0x10b0] sm:$0xff]
    %v561 = vld [vmem:[%s1 + $0x10b8] sm:$0xff]
    %v562 = vld [vmem:[%s1 + $0x10c0] sm:$0xff]
    %v563 = vld [vmem:[%s1 + $0x10c8] sm:$0xff]
    %v564 = vld [vmem:[%s1 + $0x10d0] sm:$0xff]
    %v565 = vld [vmem:[%s1 + $0x10d8] sm:$0xff]
    %v566 = vld [vmem:[%s1 + $0x10e0] sm:$0xff]
    %v567 = vld [vmem:[%s1 + $0x10e8] sm:$0xff]
    %v568 = vld [vmem:[%s1 + $0x10f0] sm:$0xff]
    %v569 = vld [vmem:[%s1 + $0x10f8] sm:$0xff]
    %v570 = vld [vmem:[%s1 + $0x1100] sm:$0xff]
    %v571 = vld [vmem:[%s1 + $0x1108] sm:$0xff]
    %v572 = vld [vmem:[%s1 + $0x1110] sm:$0xff]
    %v573 = vld [vmem:[%s1 + $0x1118] sm:$0xff]
    %v574 = vld [vmem:[%s1 + $0x1120] sm:$0xff]
    %v575 = vld [vmem:[%s1 + $0x1128] sm:$0xff]
    %v576 = vld [vmem:[%s1 + $0x1130] sm:$0xff]
    %v577 = vld [vmem:[%s1 + $0x1138] sm:$0xff]
    %v578 = vld [vmem:[%s1 + $0x1140] sm:$0xff]
    %v579 = vld [vmem:[%s1 + $0x1148] sm:$0xff]
    %v580 = vld [vmem:[%s1 + $0x1150] sm:$0xff]
    %v581 = vld [vmem:[%s1 + $0x1158] sm:$0xff]
    %v582 = vld [vmem:[%s1 + $0x1160] sm:$0xff]
    %v583 = vld [vmem:[%s1 + $0x1168] sm:$0xff]
    %v584 = vld [vmem:[%s1 + $0x1170] sm:$0xff]
    %v585 = vld [vmem:[%s1 + $0x1178] sm:$0xff]
    %v586 = vld [vmem:[%s1 + $0x1180] sm:$0xff]
    %v587 = vld [vmem:[%s1 + $0x1188] sm:$0xff]
    %v588 = vld [vmem:[%s1 + $0x1190] sm:$0xff]
    %v589 = vld [vmem:[%s1 + $0x1198] sm:$0xff]
    %v590 = vld [vmem:[%s1 + $0x11a0] sm:$0xff]
    %v591 = vld [vmem:[%s1 + $0x11a8] sm:$0xff]
    %v592 = vld [vmem:[%s1 + $0x11b0] sm:$0xff]
    %v593 = vld [vmem:[%s1 + $0x11b8] sm:$0xff]
    %v594 = vld [vmem:[%s1 + $0x11c0] sm:$0xff]
    %v595 = vld [vmem:[%s1 + $0x11c8] sm:$0xff]
    %v596 = vld [vmem:[%s1 + $0x11d0] sm:$0xff]
    %v597 = vld [vmem:[%s1 + $0x11d8] sm:$0xff]
    %v598 = vld [vmem:[%s1 + $0x11e0] sm:$0xff]
    %v599 = vld [vmem:[%s1 + $0x11e8] sm:$0xff]
    %v600 = vld [vmem:[%s1 + $0x11f0] sm:$0xff]
    %v601 = vld [vmem:[%s1 + $0x11f8] sm:$0xff]
    %v602 = vld [vmem:[%s1 + $0x1200] sm:$0xff]
    %v603 = vld [vmem:[%s1 + $0x1208] sm:$0xff]
    %v604 = vld [vmem:[%s1 + $0x1210] sm:$0xff]
    %v605 = vld [vmem:[%s1 + $0x1218] sm:$0xff]
    %v606 = vld [vmem:[%s1 + $0x1220] sm:$0xff]
    %v607 = vld [vmem:[%s1 + $0x1228] sm:$0xff]
    %v608 = vld [vmem:[%s1 + $0x1230] sm:$0xff]
    %v609 = vld [vmem:[%s1 + $0x1238] sm:$0xff]
    %v610 = vld [vmem:[%s1 + $0x1240] sm:$0xff]
    %v611 = vld [vmem:[%s1 + $0x1248] sm:$0xff]
    %v612 = vld [vmem:[%s1 + $0x1250] sm:$0xff]
    %v613 = vld [vmem:[%s1 + $0x1258] sm:$0xff]
    %v614 = vld [vmem:[%s1 + $0x1260] sm:$0xff]
    %v615 = vld [vmem:[%s1 + $0x1268] sm:$0xff]
    %v616 = vld [vmem:[%s1 + $0x1270] sm:$0xff]
    %v617 = vld [vmem:[%s1 + $0x1278] sm:$0xff]
    %v618 = vld [vmem:[%s1 + $0x1280] sm:$0xff]
    %v619 = vld [vmem:[%s1 + $0x1288] sm:$0xff]
    %v620 = vld [vmem:[%s1 + $0x1290] sm:$0xff]
    %v621 = vld [vmem:[%s1 + $0x1298] sm:$0xff]
    %v622 = vld [vmem:[%s1 + $0x12a0] sm:$0xff]
    %v623 = vld [vmem:[%s1 + $0x12a8] sm:$0xff]
    %v624 = vld [vmem:[%s1 + $0x12b0] sm:$0xff]
    %v625 = vld [vmem:[%s1 + $0x12b8] sm:$0xff]
    %v626 = vld [vmem:[%s1 + $0x12c0] sm:$0xff]
    %v627 = vld [vmem:[%s1 + $0x12c8] sm:$0xff]
    %v628 = vld [vmem:[%s1 + $0x12d0] sm:$0xff]
    %v629 = vld [vmem:[%s1 + $0x12d8] sm:$0xff]
    %v630 = vld [vmem:[%s1 + $0x12e0] sm:$0xff]
    %v631 = vld [vmem:[%s1 + $0x12e8] sm:$0xff]
    %v632 = vld [vmem:[%s1 + $0x12f0] sm:$0xff]
    %v633 = vld [vmem:[%s1 + $0x12f8] sm:$0xff]
    %s634 = sld [smem:[#allocation2]]
    %v635 = vstv %s634
    %646 = vst [vmem:[#allocation1] ss:$4 sm:$0xff] %v16
    %s647 = scalar_lea.vmem [#allocation1], 32
    %648 = vst [vmem:[%s647] ss:$4 sm:$0xff] %v17
    %v649 = vld.sshfl [vmem:[#allocation1] sm:$0xff pattern:$0x73625140]
    %v650 = vld.sshfl [vmem:[#allocation1 + $0x8] sm:$0xff pattern:$0x73625140]
    %v651 = vld.sshfl [vmem:[#allocation1 + $0x10] sm:$0xff pattern:$0x73625140]
    %v652 = vld.sshfl [vmem:[#allocation1 + $0x18] sm:$0xff pattern:$0x73625140]
    %v653 = vld.sshfl [vmem:[#allocation1 + $0x20] sm:$0xff pattern:$0x73625140]
    %v654 = vld.sshfl [vmem:[#allocation1 + $0x28] sm:$0xff pattern:$0x73625140]
    %v655 = vld.sshfl [vmem:[#allocation1 + $0x30] sm:$0xff pattern:$0x73625140]
    %v656 = vld.sshfl [vmem:[#allocation1 + $0x38] sm:$0xff pattern:$0x73625140]
    %657 = vst [vmem:[#allocation1] ss:$4 sm:$0xff] %v18
    %658 = vst [vmem:[%s647] ss:$4 sm:$0xff] %v19
    %v659 = vld.sshfl [vmem:[#allocation1] sm:$0xff pattern:$0x73625140]
    %v660 = vld.sshfl [vmem:[#allocation1 + $0x8] sm:$0xff pattern:$0x73625140]
    %v661 = vld.sshfl [vmem:[#allocation1 + $0x10] sm:$0xff pattern:$0x73625140]
    %v662 = vld.sshfl [vmem:[#allocation1 + $0x18] sm:$0xff pattern:$0x73625140]
    %v663 = vld.sshfl [vmem:[#allocation1 + $0x20] sm:$0xff pattern:$0x73625140]
    %v664 = vld.sshfl [vmem:[#allocation1 + $0x28] sm:$0xff pattern:$0x73625140]
    %v665 = vld.sshfl [vmem:[#allocation1 + $0x30] sm:$0xff pattern:$0x73625140]
    %v666 = vld.sshfl [vmem:[#allocation1 + $0x38] sm:$0xff pattern:$0x73625140]
    %667 = vst [vmem:[#allocation1] ss:$4 sm:$0xff] %v20
    %668 = vst [vmem:[%s647] ss:$4 sm:$0xff] %v21
    %v669 = vld.sshfl [vmem:[#allocation1] sm:$0xff pattern:$0x73625140]
    %v670 = vld.sshfl [vmem:[#allocation1 + $0x8] sm:$0xff pattern:$0x73625140]
    %v671 = vld.sshfl [vmem:[#allocation1 + $0x10] sm:$0xff pattern:$0x73625140]
    %v672 = vld.sshfl [vmem:[#allocation1 + $0x18] sm:$0xff pattern:$0x73625140]
    %v673 = vld.sshfl [vmem:[#allocation1 + $0x20] sm:$0xff pattern:$0x73625140]
    %v674 = vld.sshfl [vmem:[#allocation1 + $0x28] sm:$0xff pattern:$0x73625140]
    %v675 = vld.sshfl [vmem:[#allocation1 + $0x30] sm:$0xff pattern:$0x73625140]
    %v676 = vld.sshfl [vmem:[#allocation1 + $0x38] sm:$0xff pattern:$0x73625140]
    %677 = vst [vmem:[#allocation1] ss:$4 sm:$0xff] %v22
    %678 = vst [vmem:[%s647] ss:$4 sm:$0xff] %v23
    %v679 = vld.sshfl [vmem:[#allocation1] sm:$0xff pattern:$0x73625140]
    %v680 = vld.sshfl [vmem:[#allocation1 + $0x8] sm:$0xff pattern:$0x73625140]
    %v681 = vld.sshfl [vmem:[#allocation1 + $0x10] sm:$0xff pattern:$0x73625140]
    %v682 = vld.sshfl [vmem:[#allocation1 + $0x18] sm:$0xff pattern:$0x73625140]
    %v683 = vld.sshfl [vmem:[#allocation1 + $0x20] sm:$0xff pattern:$0x73625140]
    %v684 = vld.sshfl [vmem:[#allocation1 + $0x28] sm:$0xff pattern:$0x73625140]
    %v685 = vld.sshfl [vmem:[#allocation1 + $0x30] sm:$0xff pattern:$0x73625140]
    %v686 = vld.sshfl [vmem:[#allocation1 + $0x38] sm:$0xff pattern:$0x73625140]
    %687 = vst [vmem:[#allocation1] ss:$4 sm:$0xff] %v24
    %688 = vst [vmem:[%s647] ss:$4 sm:$0xff] %v25
    %v689 = vld.sshfl [vmem:[#allocation1] sm:$0xff pattern:$0x73625140]
    %v690 = vld.sshfl [vmem:[#allocation1 + $0x8] sm:$0xff pattern:$0x73625140]
    %v691 = vld.sshfl [vmem:[#allocation1 + $0x10] sm:$0xff pattern:$0x73625140]
    %v692 = vld.sshfl [vmem:[#allocation1 + $0x18] sm:$0xff pattern:$0x73625140]
    %v693 = vld.sshfl [vmem:[#allocation1 + $0x20] sm:$0xff pattern:$0x73625140]
    %v694 = vld.sshfl [vmem:[#allocation1 + $0x28] sm:$0xff pattern:$0x73625140]
    %733 = vmatpush.msra.mxu0 %v41
    %734 = vmatpush.msra.mxu0 %v40
    %735 = vmatpush.msra.mxu0 %v39
    %736 = vmatpush.msra.mxu0 %v38
    %737 = vmatpush.msra.mxu0 %v37
    %738 = vmatpush.msra.mxu0 %v36
    %739 = vmatpush.msra.mxu0 %v35
    %740 = vmatpush.msra.mxu0 %v34
    %741 = vmatpush.msra.mxu0 %v33
    %742 = vmatpush.msra.mxu0 %v32
    %743 = vmatpush.msra.mxu0 %v31
    %744 = vmatpush.msra.mxu0 %v30
    %745 = vmatpush.msra.mxu0 %v29
    %746 = vmatpush.msra.mxu0 %v28
    %747 = vmatpush.msra.mxu0 %v27
    %748 = vmatpush.msra.mxu0 %v26
    %749 = vmatmul.f32.gmra.mxu0 %v649
    %v750 = vpop.f32.mrf.mxu0
    %v751 = vadd.f32 %v635, %v750
    %752 = vdwg.mxu0
    %753 = vmatpush.msra.mxu0 %v57
    %754 = vmatpush.msra.mxu0 %v56
    %755 = vmatpush.msra.mxu0 %v55
    %756 = vmatpush.msra.mxu0 %v54
    %757 = vmatpush.msra.mxu0 %v53
    %758 = vmatpush.msra.mxu0 %v52
    %759 = vmatpush.msra.mxu0 %v51
    %760 = vmatpush.msra.mxu0 %v50
    %761 = vmatpush.msra.mxu0 %v49
    %762 = vmatpush.msra.mxu0 %v48
    %763 = vmatpush.msra.mxu0 %v47
    %764 = vmatpush.msra.mxu0 %v46
    %765 = vmatpush.msra.mxu0 %v45
    %766 = vmatpush.msra.mxu0 %v44
    %767 = vmatpush.msra.mxu0 %v43
    %768 = vmatpush.msra.mxu0 %v42
    %769 = vmatmul.f32.gmra.mxu0 %v650
    %v770 = vpop.f32.mrf.mxu0
    %v771 = vadd.f32 %v751, %v770
    %772 = vdwg.mxu0
    %773 = vmatpush.msra.mxu0 %v73
    %774 = vmatpush.msra.mxu0 %v72
    %775 = vmatpush.msra.mxu0 %v71
    %776 = vmatpush.msra.mxu0 %v70
    %777 = vmatpush.msra.mxu0 %v69
    %778 = vmatpush.msra.mxu0 %v68
    %779 = vmatpush.msra.mxu0 %v67
    %780 = vmatpush.msra.mxu0 %v66
    %781 = vmatpush.msra.mxu0 %v65
    %782 = vmatpush.msra.mxu0 %v64
    %783 = vmatpush.msra.mxu0 %v63
    %784 = vmatpush.msra.mxu0 %v62
    %785 = vmatpush.msra.mxu0 %v61
    %786 = vmatpush.msra.mxu0 %v60
    %787 = vmatpush.msra.mxu0 %v59
    %788 = vmatpush.msra.mxu0 %v58
    %789 = vmatmul.f32.gmra.mxu0 %v651
    %v790 = vpop.f32.mrf.mxu0
    %v791 = vadd.f32 %v771, %v790
    %792 = vdwg.mxu0
    %793 = vmatpush.msra.mxu0 %v89
    %794 = vmatpush.msra.mxu0 %v88
    %795 = vmatpush.msra.mxu0 %v87
    %796 = vmatpush.msra.mxu0 %v86
    %797 = vmatpush.msra.mxu0 %v85
    %798 = vmatpush.msra.mxu0 %v84
    %799 = vmatpush.msra.mxu0 %v83
    %800 = vmatpush.msra.mxu0 %v82
    %801 = vmatpush.msra.mxu0 %v81
    %802 = vmatpush.msra.mxu0 %v80
    %803 = vmatpush.msra.mxu0 %v79
    %804 = vmatpush.msra.mxu0 %v78
    %805 = vmatpush.msra.mxu0 %v77
    %806 = vmatpush.msra.mxu0 %v76
    %807 = vmatpush.msra.mxu0 %v75
    %808 = vmatpush.msra.mxu0 %v74
    %809 = vmatmul.f32.gmra.mxu0 %v652
    %v810 = vpop.f32.mrf.mxu0
    %v811 = vadd.f32 %v791, %v810
    %812 = vdwg.mxu0
    %813 = vmatpush.msra.mxu0 %v105
    %814 = vmatpush.msra.mxu0 %v104
    %815 = vmatpush.msra.mxu0 %v103
    %816 = vmatpush.msra.mxu0 %v102
    %817 = vmatpush.msra.mxu0 %v101
    %818 = vmatpush.msra.mxu0 %v100
    %819 = vmatpush.msra.mxu0 %v99
    %820 = vmatpush.msra.mxu0 %v98
    %821 = vmatpush.msra.mxu0 %v97
    %822 = vmatpush.msra.mxu0 %v96
    %823 = vmatpush.msra.mxu0 %v95
    %824 = vmatpush.msra.mxu0 %v94
    %825 = vmatpush.msra.mxu0 %v93
    %826 = vmatpush.msra.mxu0 %v92
    %827 = vmatpush.msra.mxu0 %v91
    %828 = vmatpush.msra.mxu0 %v90
    %829 = vmatmul.f32.gmra.mxu0 %v653
    %v830 = vpop.f32.mrf.mxu0
    %v831 = vadd.f32 %v811, %v830
    %832 = vdwg.mxu0
    %833 = vmatpush.msra.mxu0 %v121
    %834 = vmatpush.msra.mxu0 %v120
    %835 = vmatpush.msra.mxu0 %v119
    %836 = vmatpush.msra.mxu0 %v118
    %837 = vmatpush.msra.mxu0 %v117
    %838 = vmatpush.msra.mxu0 %v116
    %839 = vmatpush.msra.mxu0 %v115
    %840 = vmatpush.msra.mxu0 %v114
    %841 = vmatpush.msra.mxu0 %v113
    %842 = vmatpush.msra.mxu0 %v112
    %843 = vmatpush.msra.mxu0 %v111
    %844 = vmatpush.msra.mxu0 %v110
    %845 = vmatpush.msra.mxu0 %v109
    %846 = vmatpush.msra.mxu0 %v108
    %847 = vmatpush.msra.mxu0 %v107
    %848 = vmatpush.msra.mxu0 %v106
    %849 = vmatmul.f32.gmra.mxu0 %v654
    %v850 = vpop.f32.mrf.mxu0
    %v851 = vadd.f32 %v831, %v850
    %852 = vdwg.mxu0
    %853 = vmatpush.msra.mxu0 %v137
    %854 = vmatpush.msra.mxu0 %v136
    %855 = vmatpush.msra.mxu0 %v135
    %856 = vmatpush.msra.mxu0 %v134
    %857 = vmatpush.msra.mxu0 %v133
    %858 = vmatpush.msra.mxu0 %v132
    %859 = vmatpush.msra.mxu0 %v131
    %860 = vmatpush.msra.mxu0 %v130
    %861 = vmatpush.msra.mxu0 %v129
    %862 = vmatpush.msra.mxu0 %v128
    %863 = vmatpush.msra.mxu0 %v127
    %864 = vmatpush.msra.mxu0 %v126
    %865 = vmatpush.msra.mxu0 %v125
    %866 = vmatpush.msra.mxu0 %v124
    %867 = vmatpush.msra.mxu0 %v123
    %868 = vmatpush.msra.mxu0 %v122
    %869 = vmatmul.f32.gmra.mxu0 %v655
    %v870 = vpop.f32.mrf.mxu0
    %v871 = vadd.f32 %v851, %v870
    %872 = vdwg.mxu0
    %873 = vmatpush.msra.mxu0 %v153
    %874 = vmatpush.msra.mxu0 %v152
    %875 = vmatpush.msra.mxu0 %v151
    %876 = vmatpush.msra.mxu0 %v150
    %877 = vmatpush.msra.mxu0 %v149
    %878 = vmatpush.msra.mxu0 %v148
    %879 = vmatpush.msra.mxu0 %v147
    %880 = vmatpush.msra.mxu0 %v146
    %881 = vmatpush.msra.mxu0 %v145
    %882 = vmatpush.msra.mxu0 %v144
    %883 = vmatpush.msra.mxu0 %v143
    %884 = vmatpush.msra.mxu0 %v142
    %885 = vmatpush.msra.mxu0 %v141
    %886 = vmatpush.msra.mxu0 %v140
    %887 = vmatpush.msra.mxu0 %v139
    %888 = vmatpush.msra.mxu0 %v138
    %889 = vmatmul.f32.gmra.mxu0 %v656
    %v890 = vpop.f32.mrf.mxu0
    %v891 = vadd.f32 %v871, %v890
    %892 = vdwg.mxu0
    %893 = vmatpush.msra.mxu0 %v169
    %894 = vmatpush.msra.mxu0 %v168
    %895 = vmatpush.msra.mxu0 %v167
    %896 = vmatpush.msra.mxu0 %v166
    %897 = vmatpush.msra.mxu0 %v165
    %898 = vmatpush.msra.mxu0 %v164
    %899 = vmatpush.msra.mxu0 %v163
    %900 = vmatpush.msra.mxu0 %v162
    %901 = vmatpush.msra.mxu0 %v161
    %902 = vmatpush.msra.mxu0 %v160
    %903 = vmatpush.msra.mxu0 %v159
    %904 = vmatpush.msra.mxu0 %v158
    %905 = vmatpush.msra.mxu0 %v157
    %906 = vmatpush.msra.mxu0 %v156
    %907 = vmatpush.msra.mxu0 %v155
    %908 = vmatpush.msra.mxu0 %v154
    %909 = vmatmul.f32.gmra.mxu0 %v659
    %v910 = vpop.f32.mrf.mxu0
    %v911 = vadd.f32 %v891, %v910
    %912 = vdwg.mxu0
    %913 = vmatpush.msra.mxu0 %v185
    %914 = vmatpush.msra.mxu0 %v184
    %915 = vmatpush.msra.mxu0 %v183
    %916 = vmatpush.msra.mxu0 %v182
    %917 = vmatpush.msra.mxu0 %v181
    %918 = vmatpush.msra.mxu0 %v180
    %919 = vmatpush.msra.mxu0 %v179
    %920 = vmatpush.msra.mxu0 %v178
    %921 = vmatpush.msra.mxu0 %v177
    %922 = vmatpush.msra.mxu0 %v176
    %923 = vmatpush.msra.mxu0 %v175
    %924 = vmatpush.msra.mxu0 %v174
    %925 = vmatpush.msra.mxu0 %v173
    %926 = vmatpush.msra.mxu0 %v172
    %927 = vmatpush.msra.mxu0 %v171
    %928 = vmatpush.msra.mxu0 %v170
    %929 = vmatmul.f32.gmra.mxu0 %v660
    %v930 = vpop.f32.mrf.mxu0
    %v931 = vadd.f32 %v911, %v930
    %932 = vdwg.mxu0
    %933 = vmatpush.msra.mxu0 %v201
    %934 = vmatpush.msra.mxu0 %v200
    %935 = vmatpush.msra.mxu0 %v199
    %936 = vmatpush.msra.mxu0 %v198
    %937 = vmatpush.msra.mxu0 %v197
    %938 = vmatpush.msra.mxu0 %v196
    %939 = vmatpush.msra.mxu0 %v195
    %940 = vmatpush.msra.mxu0 %v194
    %941 = vmatpush.msra.mxu0 %v193
    %942 = vmatpush.msra.mxu0 %v192
    %943 = vmatpush.msra.mxu0 %v191
    %944 = vmatpush.msra.mxu0 %v190
    %945 = vmatpush.msra.mxu0 %v189
    %946 = vmatpush.msra.mxu0 %v188
    %947 = vmatpush.msra.mxu0 %v187
    %948 = vmatpush.msra.mxu0 %v186
    %949 = vmatmul.f32.gmra.mxu0 %v661
    %v950 = vpop.f32.mrf.mxu0
    %v951 = vadd.f32 %v931, %v950
    %952 = vdwg.mxu0
    %953 = vmatpush.msra.mxu0 %v217
    %954 = vmatpush.msra.mxu0 %v216
    %955 = vmatpush.msra.mxu0 %v215
    %956 = vmatpush.msra.mxu0 %v214
    %957 = vmatpush.msra.mxu0 %v213
    %958 = vmatpush.msra.mxu0 %v212
    %959 = vmatpush.msra.mxu0 %v211
    %960 = vmatpush.msra.mxu0 %v210
    %961 = vmatpush.msra.mxu0 %v209
    %962 = vmatpush.msra.mxu0 %v208
    %963 = vmatpush.msra.mxu0 %v207
    %964 = vmatpush.msra.mxu0 %v206
    %965 = vmatpush.msra.mxu0 %v205
    %966 = vmatpush.msra.mxu0 %v204
    %967 = vmatpush.msra.mxu0 %v203
    %968 = vmatpush.msra.mxu0 %v202
    %969 = vmatmul.f32.gmra.mxu0 %v662
    %v970 = vpop.f32.mrf.mxu0
    %v971 = vadd.f32 %v951, %v970
    %972 = vdwg.mxu0
    %973 = vmatpush.msra.mxu0 %v233
    %974 = vmatpush.msra.mxu0 %v232
    %975 = vmatpush.msra.mxu0 %v231
    %976 = vmatpush.msra.mxu0 %v230
    %977 = vmatpush.msra.mxu0 %v229
    %978 = vmatpush.msra.mxu0 %v228
    %979 = vmatpush.msra.mxu0 %v227
    %980 = vmatpush.msra.mxu0 %v226
    %981 = vmatpush.msra.mxu0 %v225
    %982 = vmatpush.msra.mxu0 %v224
    %983 = vmatpush.msra.mxu0 %v223
    %984 = vmatpush.msra.mxu0 %v222
    %985 = vmatpush.msra.mxu0 %v221
    %986 = vmatpush.msra.mxu0 %v220
    %987 = vmatpush.msra.mxu0 %v219
    %988 = vmatpush.msra.mxu0 %v218
    %989 = vmatmul.f32.gmra.mxu0 %v663
    %v990 = vpop.f32.mrf.mxu0
    %v991 = vadd.f32 %v971, %v990
    %992 = vdwg.mxu0
    %993 = vmatpush.msra.mxu0 %v249
    %994 = vmatpush.msra.mxu0 %v248
    %995 = vmatpush.msra.mxu0 %v247
    %996 = vmatpush.msra.mxu0 %v246
    %997 = vmatpush.msra.mxu0 %v245
    %998 = vmatpush.msra.mxu0 %v244
    %999 = vmatpush.msra.mxu0 %v243
    %1000 = vmatpush.msra.mxu0 %v242
    %1001 = vmatpush.msra.mxu0 %v241
    %1002 = vmatpush.msra.mxu0 %v240
    %1003 = vmatpush.msra.mxu0 %v239
    %1004 = vmatpush.msra.mxu0 %v238
    %1005 = vmatpush.msra.mxu0 %v237
    %1006 = vmatpush.msra.mxu0 %v236
    %1007 = vmatpush.msra.mxu0 %v235
    %1008 = vmatpush.msra.mxu0 %v234
    %1009 = vmatmul.f32.gmra.mxu0 %v664
    %v1010 = vpop.f32.mrf.mxu0
    %v1011 = vadd.f32 %v991, %v1010
    %1012 = vdwg.mxu0
    %1013 = vmatpush.msra.mxu0 %v265
    %1014 = vmatpush.msra.mxu0 %v264
    %1015 = vmatpush.msra.mxu0 %v263
    %1016 = vmatpush.msra.mxu0 %v262
    %1017 = vmatpush.msra.mxu0 %v261
    %1018 = vmatpush.msra.mxu0 %v260
    %1019 = vmatpush.msra.mxu0 %v259
    %1020 = vmatpush.msra.mxu0 %v258
    %1021 = vmatpush.msra.mxu0 %v257
    %1022 = vmatpush.msra.mxu0 %v256
    %1023 = vmatpush.msra.mxu0 %v255
    %1024 = vmatpush.msra.mxu0 %v254
    %1025 = vmatpush.msra.mxu0 %v253
    %1026 = vmatpush.msra.mxu0 %v252
    %1027 = vmatpush.msra.mxu0 %v251
    %1028 = vmatpush.msra.mxu0 %v250
    %1029 = vmatmul.f32.gmra.mxu0 %v665
    %v1030 = vpop.f32.mrf.mxu0
    %v1031 = vadd.f32 %v1011, %v1030
    %1032 = vdwg.mxu0
    %1033 = vmatpush.msra.mxu0 %v281
    %1034 = vmatpush.msra.mxu0 %v280
    %1035 = vmatpush.msra.mxu0 %v279
    %1036 = vmatpush.msra.mxu0 %v278
    %1037 = vmatpush.msra.mxu0 %v277
    %1038 = vmatpush.msra.mxu0 %v276
    %1039 = vmatpush.msra.mxu0 %v275
    %1040 = vmatpush.msra.mxu0 %v274
    %1041 = vmatpush.msra.mxu0 %v273
    %1042 = vmatpush.msra.mxu0 %v272
    %1043 = vmatpush.msra.mxu0 %v271
    %1044 = vmatpush.msra.mxu0 %v270
    %1045 = vmatpush.msra.mxu0 %v269
    %1046 = vmatpush.msra.mxu0 %v268
    %1047 = vmatpush.msra.mxu0 %v267
    %1048 = vmatpush.msra.mxu0 %v266
    %1049 = vmatmul.f32.gmra.mxu0 %v666
    %v1050 = vpop.f32.mrf.mxu0
    %v1051 = vadd.f32 %v1031, %v1050
    %1052 = vdwg.mxu0
    %1053 = vmatpush.msra.mxu0 %v297
    %1054 = vmatpush.msra.mxu0 %v296
    %1055 = vmatpush.msra.mxu0 %v295
    %1056 = vmatpush.msra.mxu0 %v294
    %1057 = vmatpush.msra.mxu0 %v293
    %1058 = vmatpush.msra.mxu0 %v292
    %1059 = vmatpush.msra.mxu0 %v291
    %1060 = vmatpush.msra.mxu0 %v290
    %1061 = vmatpush.msra.mxu0 %v289
    %1062 = vmatpush.msra.mxu0 %v288
    %1063 = vmatpush.msra.mxu0 %v287
    %1064 = vmatpush.msra.mxu0 %v286
    %1065 = vmatpush.msra.mxu0 %v285
    %1066 = vmatpush.msra.mxu0 %v284
    %1067 = vmatpush.msra.mxu0 %v283
    %1068 = vmatpush.msra.mxu0 %v282
    %1069 = vmatmul.f32.gmra.mxu0 %v669
    %v1070 = vpop.f32.mrf.mxu0
    %v1071 = vadd.f32 %v1051, %v1070
    %1072 = vdwg.mxu0
    %1073 = vmatpush.msra.mxu0 %v313
    %1074 = vmatpush.msra.mxu0 %v312
    %1075 = vmatpush.msra.mxu0 %v311
    %1076 = vmatpush.msra.mxu0 %v310
    %1077 = vmatpush.msra.mxu0 %v309
    %1078 = vmatpush.msra.mxu0 %v308
    %1079 = vmatpush.msra.mxu0 %v307
    %1080 = vmatpush.msra.mxu0 %v306
    %1081 = vmatpush.msra.mxu0 %v305
    %1082 = vmatpush.msra.mxu0 %v304
    %1083 = vmatpush.msra.mxu0 %v303
    %1084 = vmatpush.msra.mxu0 %v302
    %1085 = vmatpush.msra.mxu0 %v301
    %1086 = vmatpush.msra.mxu0 %v300
    %1087 = vmatpush.msra.mxu0 %v299
    %1088 = vmatpush.msra.mxu0 %v298
    %1089 = vmatmul.f32.gmra.mxu0 %v670
    %v1090 = vpop.f32.mrf.mxu0
    %v1091 = vadd.f32 %v1071, %v1090
    %1092 = vdwg.mxu0
    %1093 = vmatpush.msra.mxu0 %v329
    %1094 = vmatpush.msra.mxu0 %v328
    %1095 = vmatpush.msra.mxu0 %v327
    %1096 = vmatpush.msra.mxu0 %v326
    %1097 = vmatpush.msra.mxu0 %v325
    %1098 = vmatpush.msra.mxu0 %v324
    %1099 = vmatpush.msra.mxu0 %v323
    %1100 = vmatpush.msra.mxu0 %v322
    %1101 = vmatpush.msra.mxu0 %v321
    %1102 = vmatpush.msra.mxu0 %v320
    %1103 = vmatpush.msra.mxu0 %v319
    %1104 = vmatpush.msra.mxu0 %v318
    %1105 = vmatpush.msra.mxu0 %v317
    %1106 = vmatpush.msra.mxu0 %v316
    %1107 = vmatpush.msra.mxu0 %v315
    %1108 = vmatpush.msra.mxu0 %v314
    %1109 = vmatmul.f32.gmra.mxu0 %v671
    %v1110 = vpop.f32.mrf.mxu0
    %v1111 = vadd.f32 %v1091, %v1110
    %1112 = vdwg.mxu0
    %1113 = vmatpush.msra.mxu0 %v345
    %1114 = vmatpush.msra.mxu0 %v344
    %1115 = vmatpush.msra.mxu0 %v343
    %1116 = vmatpush.msra.mxu0 %v342
    %1117 = vmatpush.msra.mxu0 %v341
    %1118 = vmatpush.msra.mxu0 %v340
    %1119 = vmatpush.msra.mxu0 %v339
    %1120 = vmatpush.msra.mxu0 %v338
    %1121 = vmatpush.msra.mxu0 %v337
    %1122 = vmatpush.msra.mxu0 %v336
    %1123 = vmatpush.msra.mxu0 %v335
    %1124 = vmatpush.msra.mxu0 %v334
    %1125 = vmatpush.msra.mxu0 %v333
    %1126 = vmatpush.msra.mxu0 %v332
    %1127 = vmatpush.msra.mxu0 %v331
    %1128 = vmatpush.msra.mxu0 %v330
    %1129 = vmatmul.f32.gmra.mxu0 %v672
    %v1130 = vpop.f32.mrf.mxu0
    %v1131 = vadd.f32 %v1111, %v1130
    %1132 = vdwg.mxu0
    %1133 = vmatpush.msra.mxu0 %v361
    %1134 = vmatpush.msra.mxu0 %v360
    %1135 = vmatpush.msra.mxu0 %v359
    %1136 = vmatpush.msra.mxu0 %v358
    %1137 = vmatpush.msra.mxu0 %v357
    %1138 = vmatpush.msra.mxu0 %v356
    %1139 = vmatpush.msra.mxu0 %v355
    %1140 = vmatpush.msra.mxu0 %v354
    %1141 = vmatpush.msra.mxu0 %v353
    %1142 = vmatpush.msra.mxu0 %v352
    %1143 = vmatpush.msra.mxu0 %v351
    %1144 = vmatpush.msra.mxu0 %v350
    %1145 = vmatpush.msra.mxu0 %v349
    %1146 = vmatpush.msra.mxu0 %v348
    %1147 = vmatpush.msra.mxu0 %v347
    %1148 = vmatpush.msra.mxu0 %v346
    %1149 = vmatmul.f32.gmra.mxu0 %v673
    %v1150 = vpop.f32.mrf.mxu0
    %v1151 = vadd.f32 %v1131, %v1150
    %1152 = vdwg.mxu0
    %1153 = vmatpush.msra.mxu0 %v377
    %1154 = vmatpush.msra.mxu0 %v376
    %1155 = vmatpush.msra.mxu0 %v375
    %1156 = vmatpush.msra.mxu0 %v374
    %1157 = vmatpush.msra.mxu0 %v373
    %1158 = vmatpush.msra.mxu0 %v372
    %1159 = vmatpush.msra.mxu0 %v371
    %1160 = vmatpush.msra.mxu0 %v370
    %1161 = vmatpush.msra.mxu0 %v369
    %1162 = vmatpush.msra.mxu0 %v368
    %1163 = vmatpush.msra.mxu0 %v367
    %1164 = vmatpush.msra.mxu0 %v366
    %1165 = vmatpush.msra.mxu0 %v365
    %1166 = vmatpush.msra.mxu0 %v364
    %1167 = vmatpush.msra.mxu0 %v363
    %1168 = vmatpush.msra.mxu0 %v362
    %1169 = vmatmul.f32.gmra.mxu0 %v674
    %v1170 = vpop.f32.mrf.mxu0
    %v1171 = vadd.f32 %v1151, %v1170
    %1172 = vdwg.mxu0
    %1173 = vmatpush.msra.mxu0 %v393
    %1174 = vmatpush.msra.mxu0 %v392
    %1175 = vmatpush.msra.mxu0 %v391
    %1176 = vmatpush.msra.mxu0 %v390
    %1177 = vmatpush.msra.mxu0 %v389
    %1178 = vmatpush.msra.mxu0 %v388
    %1179 = vmatpush.msra.mxu0 %v387
    %1180 = vmatpush.msra.mxu0 %v386
    %1181 = vmatpush.msra.mxu0 %v385
    %1182 = vmatpush.msra.mxu0 %v384
    %1183 = vmatpush.msra.mxu0 %v383
    %1184 = vmatpush.msra.mxu0 %v382
    %1185 = vmatpush.msra.mxu0 %v381
    %1186 = vmatpush.msra.mxu0 %v380
    %1187 = vmatpush.msra.mxu0 %v379
    %1188 = vmatpush.msra.mxu0 %v378
    %1189 = vmatmul.f32.gmra.mxu0 %v675
    %v1190 = vpop.f32.mrf.mxu0
    %v1191 = vadd.f32 %v1171, %v1190
    %1192 = vdwg.mxu0
    %1193 = vmatpush.msra.mxu0 %v409
    %1194 = vmatpush.msra.mxu0 %v408
    %1195 = vmatpush.msra.mxu0 %v407
    %1196 = vmatpush.msra.mxu0 %v406
    %1197 = vmatpush.msra.mxu0 %v405
    %1198 = vmatpush.msra.mxu0 %v404
    %1199 = vmatpush.msra.mxu0 %v403
    %1200 = vmatpush.msra.mxu0 %v402
    %1201 = vmatpush.msra.mxu0 %v401
    %1202 = vmatpush.msra.mxu0 %v400
    %1203 = vmatpush.msra.mxu0 %v399
    %1204 = vmatpush.msra.mxu0 %v398
    %1205 = vmatpush.msra.mxu0 %v397
    %1206 = vmatpush.msra.mxu0 %v396
    %1207 = vmatpush.msra.mxu0 %v395
    %1208 = vmatpush.msra.mxu0 %v394
    %1209 = vmatmul.f32.gmra.mxu0 %v676
    %v1210 = vpop.f32.mrf.mxu0
    %v1211 = vadd.f32 %v1191, %v1210
    %1212 = vdwg.mxu0
    %1213 = vmatpush.msra.mxu0 %v425
    %1214 = vmatpush.msra.mxu0 %v424
    %1215 = vmatpush.msra.mxu0 %v423
    %1216 = vmatpush.msra.mxu0 %v422
    %1217 = vmatpush.msra.mxu0 %v421
    %1218 = vmatpush.msra.mxu0 %v420
    %1219 = vmatpush.msra.mxu0 %v419
    %1220 = vmatpush.msra.mxu0 %v418
    %1221 = vmatpush.msra.mxu0 %v417
    %1222 = vmatpush.msra.mxu0 %v416
    %1223 = vmatpush.msra.mxu0 %v415
    %1224 = vmatpush.msra.mxu0 %v414
    %1225 = vmatpush.msra.mxu0 %v413
    %1226 = vmatpush.msra.mxu0 %v412
    %1227 = vmatpush.msra.mxu0 %v411
    %1228 = vmatpush.msra.mxu0 %v410
    %1229 = vmatmul.f32.gmra.mxu0 %v679
    %v1230 = vpop.f32.mrf.mxu0
    %v1231 = vadd.f32 %v1211, %v1230
    %1232 = vdwg.mxu0
    %1233 = vmatpush.msra.mxu0 %v441
    %1234 = vmatpush.msra.mxu0 %v440
    %1235 = vmatpush.msra.mxu0 %v439
    %1236 = vmatpush.msra.mxu0 %v438
    %1237 = vmatpush.msra.mxu0 %v437
    %1238 = vmatpush.msra.mxu0 %v436
    %1239 = vmatpush.msra.mxu0 %v435
    %1240 = vmatpush.msra.mxu0 %v434
    %1241 = vmatpush.msra.mxu0 %v433
    %1242 = vmatpush.msra.mxu0 %v432
    %1243 = vmatpush.msra.mxu0 %v431
    %1244 = vmatpush.msra.mxu0 %v430
    %1245 = vmatpush.msra.mxu0 %v429
    %1246 = vmatpush.msra.mxu0 %v428
    %1247 = vmatpush.msra.mxu0 %v427
    %1248 = vmatpush.msra.mxu0 %v426
    %1249 = vmatmul.f32.gmra.mxu0 %v680
    %v1250 = vpop.f32.mrf.mxu0
    %v1251 = vadd.f32 %v1231, %v1250
    %1252 = vdwg.mxu0
    %1253 = vmatpush.msra.mxu0 %v457
    %1254 = vmatpush.msra.mxu0 %v456
    %1255 = vmatpush.msra.mxu0 %v455
    %1256 = vmatpush.msra.mxu0 %v454
    %1257 = vmatpush.msra.mxu0 %v453
    %1258 = vmatpush.msra.mxu0 %v452
    %1259 = vmatpush.msra.mxu0 %v451
    %1260 = vmatpush.msra.mxu0 %v450
    %1261 = vmatpush.msra.mxu0 %v449
    %1262 = vmatpush.msra.mxu0 %v448
    %1263 = vmatpush.msra.mxu0 %v447
    %1264 = vmatpush.msra.mxu0 %v446
    %1265 = vmatpush.msra.mxu0 %v445
    %1266 = vmatpush.msra.mxu0 %v444
    %1267 = vmatpush.msra.mxu0 %v443
    %1268 = vmatpush.msra.mxu0 %v442
    %1269 = vmatmul.f32.gmra.mxu0 %v681
    %v1270 = vpop.f32.mrf.mxu0
    %v1271 = vadd.f32 %v1251, %v1270
    %1272 = vdwg.mxu0
    %1273 = vmatpush.msra.mxu0 %v473
    %1274 = vmatpush.msra.mxu0 %v472
    %1275 = vmatpush.msra.mxu0 %v471
    %1276 = vmatpush.msra.mxu0 %v470
    %1277 = vmatpush.msra.mxu0 %v469
    %1278 = vmatpush.msra.mxu0 %v468
    %1279 = vmatpush.msra.mxu0 %v467
    %1280 = vmatpush.msra.mxu0 %v466
    %1281 = vmatpush.msra.mxu0 %v465
    %1282 = vmatpush.msra.mxu0 %v464
    %1283 = vmatpush.msra.mxu0 %v463
    %1284 = vmatpush.msra.mxu0 %v462
    %1285 = vmatpush.msra.mxu0 %v461
    %1286 = vmatpush.msra.mxu0 %v460
    %1287 = vmatpush.msra.mxu0 %v459
    %1288 = vmatpush.msra.mxu0 %v458
    %1289 = vmatmul.f32.gmra.mxu0 %v682
    %v1290 = vpop.f32.mrf.mxu0
    %v1291 = vadd.f32 %v1271, %v1290
    %1292 = vdwg.mxu0
    %1293 = vmatpush.msra.mxu0 %v489
    %1294 = vmatpush.msra.mxu0 %v488
    %1295 = vmatpush.msra.mxu0 %v487
    %1296 = vmatpush.msra.mxu0 %v486
    %1297 = vmatpush.msra.mxu0 %v485
    %1298 = vmatpush.msra.mxu0 %v484
    %1299 = vmatpush.msra.mxu0 %v483
    %1300 = vmatpush.msra.mxu0 %v482
    %1301 = vmatpush.msra.mxu0 %v481
    %1302 = vmatpush.msra.mxu0 %v480
    %1303 = vmatpush.msra.mxu0 %v479
    %1304 = vmatpush.msra.mxu0 %v478
    %1305 = vmatpush.msra.mxu0 %v477
    %1306 = vmatpush.msra.mxu0 %v476
    %1307 = vmatpush.msra.mxu0 %v475
    %1308 = vmatpush.msra.mxu0 %v474
    %1309 = vmatmul.f32.gmra.mxu0 %v683
    %v1310 = vpop.f32.mrf.mxu0
    %v1311 = vadd.f32 %v1291, %v1310
    %1312 = vdwg.mxu0
    %1313 = vmatpush.msra.mxu0 %v505
    %1314 = vmatpush.msra.mxu0 %v504
    %1315 = vmatpush.msra.mxu0 %v503
    %1316 = vmatpush.msra.mxu0 %v502
    %1317 = vmatpush.msra.mxu0 %v501
    %1318 = vmatpush.msra.mxu0 %v500
    %1319 = vmatpush.msra.mxu0 %v499
    %1320 = vmatpush.msra.mxu0 %v498
    %1321 = vmatpush.msra.mxu0 %v497
    %1322 = vmatpush.msra.mxu0 %v496
    %1323 = vmatpush.msra.mxu0 %v495
    %1324 = vmatpush.msra.mxu0 %v494
    %1325 = vmatpush.msra.mxu0 %v493
    %1326 = vmatpush.msra.mxu0 %v492
    %1327 = vmatpush.msra.mxu0 %v491
    %1328 = vmatpush.msra.mxu0 %v490
    %1329 = vmatmul.f32.gmra.mxu0 %v684
    %v1330 = vpop.f32.mrf.mxu0
    %v1331 = vadd.f32 %v1311, %v1330
    %1332 = vdwg.mxu0
    %1333 = vmatpush.msra.mxu0 %v521
    %1334 = vmatpush.msra.mxu0 %v520
    %1335 = vmatpush.msra.mxu0 %v519
    %1336 = vmatpush.msra.mxu0 %v518
    %1337 = vmatpush.msra.mxu0 %v517
    %1338 = vmatpush.msra.mxu0 %v516
    %1339 = vmatpush.msra.mxu0 %v515
    %1340 = vmatpush.msra.mxu0 %v514
    %1341 = vmatpush.msra.mxu0 %v513
    %1342 = vmatpush.msra.mxu0 %v512
    %1343 = vmatpush.msra.mxu0 %v511
    %1344 = vmatpush.msra.mxu0 %v510
    %1345 = vmatpush.msra.mxu0 %v509
    %1346 = vmatpush.msra.mxu0 %v508
    %1347 = vmatpush.msra.mxu0 %v507
    %1348 = vmatpush.msra.mxu0 %v506
    %1349 = vmatmul.f32.gmra.mxu0 %v685
    %v1350 = vpop.f32.mrf.mxu0
    %v1351 = vadd.f32 %v1331, %v1350
    %1352 = vdwg.mxu0
    %1353 = vmatpush.msra.mxu0 %v537
    %1354 = vmatpush.msra.mxu0 %v536
    %1355 = vmatpush.msra.mxu0 %v535
    %1356 = vmatpush.msra.mxu0 %v534
    %1357 = vmatpush.msra.mxu0 %v533
    %1358 = vmatpush.msra.mxu0 %v532
    %1359 = vmatpush.msra.mxu0 %v531
    %1360 = vmatpush.msra.mxu0 %v530
    %1361 = vmatpush.msra.mxu0 %v529
    %1362 = vmatpush.msra.mxu0 %v528
    %1363 = vmatpush.msra.mxu0 %v527
    %1364 = vmatpush.msra.mxu0 %v526
    %1365 = vmatpush.msra.mxu0 %v525
    %1366 = vmatpush.msra.mxu0 %v524
    %1367 = vmatpush.msra.mxu0 %v523
    %1368 = vmatpush.msra.mxu0 %v522
    %1369 = vmatmul.f32.gmra.mxu0 %v686
    %v1370 = vpop.f32.mrf.mxu0
    %v1371 = vadd.f32 %v1351, %v1370
    %1372 = vdwg.mxu0
    %1373 = vmatpush.msra.mxu0 %v553
    %1374 = vmatpush.msra.mxu0 %v552
    %1375 = vmatpush.msra.mxu0 %v551
    %1376 = vmatpush.msra.mxu0 %v550
    %1377 = vmatpush.msra.mxu0 %v549
    %1378 = vmatpush.msra.mxu0 %v548
    %1379 = vmatpush.msra.mxu0 %v547
    %1380 = vmatpush.msra.mxu0 %v546
    %1381 = vmatpush.msra.mxu0 %v545
    %1382 = vmatpush.msra.mxu0 %v544
    %1383 = vmatpush.msra.mxu0 %v543
    %1384 = vmatpush.msra.mxu0 %v542
    %1385 = vmatpush.msra.mxu0 %v541
    %1386 = vmatpush.msra.mxu0 %v540
    %1387 = vmatpush.msra.mxu0 %v539
    %1388 = vmatpush.msra.mxu0 %v538
    %1389 = vmatmul.f32.gmra.mxu0 %v689
    %v1390 = vpop.f32.mrf.mxu0
    %v1391 = vadd.f32 %v1371, %v1390
    %1392 = vdwg.mxu0
    %1393 = vmatpush.msra.mxu0 %v569
    %1394 = vmatpush.msra.mxu0 %v568
    %1395 = vmatpush.msra.mxu0 %v567
    %1396 = vmatpush.msra.mxu0 %v566
    %1397 = vmatpush.msra.mxu0 %v565
    %1398 = vmatpush.msra.mxu0 %v564
    %1399 = vmatpush.msra.mxu0 %v563
    %1400 = vmatpush.msra.mxu0 %v562
    %1401 = vmatpush.msra.mxu0 %v561
    %1402 = vmatpush.msra.mxu0 %v560
    %1403 = vmatpush.msra.mxu0 %v559
    %1404 = vmatpush.msra.mxu0 %v558
    %1405 = vmatpush.msra.mxu0 %v557
    %1406 = vmatpush.msra.mxu0 %v556
    %1407 = vmatpush.msra.mxu0 %v555
    %1408 = vmatpush.msra.mxu0 %v554
    %1409 = vmatmul.f32.gmra.mxu0 %v690
    %v1410 = vpop.f32.mrf.mxu0
    %v1411 = vadd.f32 %v1391, %v1410
    %1412 = vdwg.mxu0
    %1413 = vmatpush.msra.mxu0 %v585
    %1414 = vmatpush.msra.mxu0 %v584
    %1415 = vmatpush.msra.mxu0 %v583
    %1416 = vmatpush.msra.mxu0 %v582
    %1417 = vmatpush.msra.mxu0 %v581
    %1418 = vmatpush.msra.mxu0 %v580
    %1419 = vmatpush.msra.mxu0 %v579
    %1420 = vmatpush.msra.mxu0 %v578
    %1421 = vmatpush.msra.mxu0 %v577
    %1422 = vmatpush.msra.mxu0 %v576
    %1423 = vmatpush.msra.mxu0 %v575
    %1424 = vmatpush.msra.mxu0 %v574
    %1425 = vmatpush.msra.mxu0 %v573
    %1426 = vmatpush.msra.mxu0 %v572
    %1427 = vmatpush.msra.mxu0 %v571
    %1428 = vmatpush.msra.mxu0 %v570
    %1429 = vmatmul.f32.gmra.mxu0 %v691
    %v1430 = vpop.f32.mrf.mxu0
    %v1431 = vadd.f32 %v1411, %v1430
    %1432 = vdwg.mxu0
    %1433 = vmatpush.msra.mxu0 %v601
    %1434 = vmatpush.msra.mxu0 %v600
    %1435 = vmatpush.msra.mxu0 %v599
    %1436 = vmatpush.msra.mxu0 %v598
    %1437 = vmatpush.msra.mxu0 %v597
    %1438 = vmatpush.msra.mxu0 %v596
    %1439 = vmatpush.msra.mxu0 %v595
    %1440 = vmatpush.msra.mxu0 %v594
    %1441 = vmatpush.msra.mxu0 %v593
    %1442 = vmatpush.msra.mxu0 %v592
    %1443 = vmatpush.msra.mxu0 %v591
    %1444 = vmatpush.msra.mxu0 %v590
    %1445 = vmatpush.msra.mxu0 %v589
    %1446 = vmatpush.msra.mxu0 %v588
    %1447 = vmatpush.msra.mxu0 %v587
    %1448 = vmatpush.msra.mxu0 %v586
    %1449 = vmatmul.f32.gmra.mxu0 %v692
    %v1450 = vpop.f32.mrf.mxu0
    %v1451 = vadd.f32 %v1431, %v1450
    %1452 = vdwg.mxu0
    %1453 = vmatpush.msra.mxu0 %v617
    %1454 = vmatpush.msra.mxu0 %v616
    %1455 = vmatpush.msra.mxu0 %v615
    %1456 = vmatpush.msra.mxu0 %v614
    %1457 = vmatpush.msra.mxu0 %v613
    %1458 = vmatpush.msra.mxu0 %v612
    %1459 = vmatpush.msra.mxu0 %v611
    %1460 = vmatpush.msra.mxu0 %v610
    %1461 = vmatpush.msra.mxu0 %v609
    %1462 = vmatpush.msra.mxu0 %v608
    %1463 = vmatpush.msra.mxu0 %v607
    %1464 = vmatpush.msra.mxu0 %v606
    %1465 = vmatpush.msra.mxu0 %v605
    %1466 = vmatpush.msra.mxu0 %v604
    %1467 = vmatpush.msra.mxu0 %v603
    %1468 = vmatpush.msra.mxu0 %v602
    %1469 = vmatmul.f32.gmra.mxu0 %v693
    %v1470 = vpop.f32.mrf.mxu0
    %v1471 = vadd.f32 %v1451, %v1470
    %1472 = vdwg.mxu0
    %1473 = vmatpush.msra.mxu0 %v633
    %1474 = vmatpush.msra.mxu0 %v632
    %1475 = vmatpush.msra.mxu0 %v631
    %1476 = vmatpush.msra.mxu0 %v630
    %1477 = vmatpush.msra.mxu0 %v629
    %1478 = vmatpush.msra.mxu0 %v628
    %1479 = vmatpush.msra.mxu0 %v627
    %1480 = vmatpush.msra.mxu0 %v626
    %1481 = vmatpush.msra.mxu0 %v625
    %1482 = vmatpush.msra.mxu0 %v624
    %1483 = vmatpush.msra.mxu0 %v623
    %1484 = vmatpush.msra.mxu0 %v622
    %1485 = vmatpush.msra.mxu0 %v621
    %1486 = vmatpush.msra.mxu0 %v620
    %1487 = vmatpush.msra.mxu0 %v619
    %1488 = vmatpush.msra.mxu0 %v618
    %1489 = vmatmul.f32.gmra.mxu0 %v694
    %v1490 = vpop.f32.mrf.mxu0
    %v1491 = vadd.f32 %v1471, %v1490
    %1492 = vdwg.mxu0
    %v1493 = vmax.f32 %v1491, 0.0
    %1494 = vst [vmem:[#allocation3] sm:$0x3] %v1493
    // Predicated region
    $region14: #{linear_relu.1} parent=1 // pred_check
      _
    $region15: #{linear_relu.1} parent=1 // pred_check_branch
      %1496 = sbr.rel (0) target = $region17
    $region16: #{linear_relu.1} parent=1 // pred_region
      %1498 = vsyncadd [#allocation4], 0
      %s1500 = sshll.u32 [#allocation3], 4
      %s1501 = int_to_ptr.vmem [resolvable:$true] %s1500
      %s1502 = sshll.u32 %s3, 4
      %s1503 = int_to_ptr.hbm [resolvable:$true] %s1502
      %1505 = dma.vmem_to_hbm [thread:$0]  %s1501, 32, %s1503, [#allocation4]
    $region17: #{linear_relu.1} parent=1 // pred_fallthru
      _
    // Predicated region
    $region18: #{linear_relu.1} parent=1 // pred_check
      _
    $region19: #{linear_relu.1} parent=1 // pred_check_branch
      %1507 = sbr.rel (0) target = $region21
    $region20: #{linear_relu.1} parent=1 // pred_region
      %1509 = dma.done [#allocation4], 32
    $region21: #{linear_relu.1} parent=1 // pred_fallthru
      _
    %1510 = vsyncpa [#allocation4], 1

</llo_original>
